<compile_context>
chip_gen: v5e
topology: v5e:2x2
jax: 0.10.0
libtpu: 0.0.40
codegen_flags: <defaults>
</compile_context>

<pallas_src>
import jax
import jax.numpy as jnp
from jax.experimental import pallas as pl
from jax.experimental.pallas import tpu as pltpu


def _round_up(x, m):
    return ((x + m - 1) // m) * m


def _pick_tile(total, candidates=(2048, 1024, 512, 256, 128)):
    for t in candidates:
        if t <= total and total % t == 0:
            return t
    return total


# PyTorch LSTM gate order in the weight matrices is (i, f, g, o).
# We repack to (i, f, o, g) so sigmoid covers a contiguous 3*Hp block and tanh
# covers the trailing Hp block.  src[d] = source gate for destination slot d.
_GATE_SRC = (0, 1, 3, 2)


def _pack_gate_weight(w, in_pad, H, Hp, dtype):
    """w: (4H, in_dim) PyTorch layout -> (in_pad, 4*Hp), gate order i,f,o,g."""
    in_dim = w.shape[1]
    wt = w.T.astype(jnp.float32)                       # (in_dim, 4H)
    out = jnp.zeros((in_pad, 4 * Hp), jnp.float32)
    for d in range(4):
        s = _GATE_SRC[d]
        out = out.at[:in_dim, d * Hp:d * Hp + H].set(wt[:, s * H:(s + 1) * H])
    return out.astype(dtype)


def _pack_gate_bias(b, H, Hp):
    out = jnp.zeros((1, 4 * Hp), jnp.float32)
    for d in range(4):
        s = _GATE_SRC[d]
        out = out.at[0, d * Hp:d * Hp + H].set(b[s * H:(s + 1) * H])
    return out


def pack_decoder_params(params, weight_dtype=jnp.float32):
    """One-time host-side packing / padding of the Decoder weights (cache this).

    weight_dtype: jnp.float32 for exact parity; jnp.bfloat16 to halve HBM->VMEM
    weight traffic on v6e/v7x (accumulation stays f32 in-kernel).
    """
    V, E = params["embedding"].shape
    L = 0
    while f"w_ih_{L}" in params:
        L += 1
    H = params["w_hh_0"].shape[1]

    Ep = _round_up(E, 128)
    Hp = _round_up(H, 128)
    Vp = _round_up(V, 128)
    Lx = max(L - 1, 1)

    emb = jnp.zeros((V, Ep), weight_dtype).at[:, :E].set(
        params["embedding"].astype(weight_dtype))

    wx0 = _pack_gate_weight(params["w_ih_0"], Ep, H, Hp, weight_dtype)
    wx = jnp.zeros((Lx, Hp, 4 * Hp), weight_dtype)
    wh = jnp.zeros((L, Hp, 4 * Hp), weight_dtype)
    b = jnp.zeros((L, 1, 4 * Hp), jnp.float32)
    for l in range(L):
        wh = wh.at[l].set(
            _pack_gate_weight(params[f"w_hh_{l}"], Hp, H, Hp, weight_dtype))
        b = b.at[l].set(
            _pack_gate_bias(params[f"b_ih_{l}"] + params[f"b_hh_{l}"], H, Hp))
        if l >= 1:
            wx = wx.at[l - 1].set(
                _pack_gate_weight(params[f"w_ih_{l}"], Hp, H, Hp, weight_dtype))

    wfc = jnp.zeros((Hp, Vp), weight_dtype).at[:H, :V].set(
        params["w_fc"].T.astype(weight_dtype))
    bfc = jnp.zeros((1, Vp), jnp.float32).at[:, :V].set(
        params["b_fc"].reshape(1, V).astype(jnp.float32))

    return dict(emb=emb, wx0=wx0, wx=wx, wh=wh, b=b, wfc=wfc, bfc=bfc,
                dims=dict(V=V, E=E, H=H, L=L, Ep=Ep, Hp=Hp, Vp=Vp))


def _make_decoder_kernel(num_layers, batch, Hp):
    L = num_layers
    H3 = 3 * Hp

    def kernel(ids_ref,        # SMEM (Bp,)            int32 token ids
               h_ref,          # VMEM (L, Bp, Hp)      f32
               c_ref,          # VMEM (L, Bp, Hp)      f32
               emb_hbm,        # HBM  (V, Ep)          weights (manual gather)
               wx0_ref,        # VMEM (Ep, 4Hp)        layer-0 W_ih^T
               wx_ref,         # VMEM (max(L-1,1), Hp, 4Hp)  layer>=1 W_ih^T
               wh_ref,         # VMEM (L, Hp, 4Hp)     W_hh^T
               b_ref,          # VMEM (L, 1, 4Hp)      b_ih + b_hh
               wfc_ref,        # VMEM (Hp, TILE_V)     fc weight tile
               bfc_ref,        # VMEM (1, TILE_V)      fc bias tile
               pred_ref,       # VMEM (Bp, TILE_V)     out
               h_out_ref,      # VMEM (L, Bp, Hp)      out (aliased to h)
               c_out_ref,      # VMEM (L, Bp, Hp)      out (aliased to c)
               emb_buf,        # VMEM (Bp, Ep)         scratch: gathered rows
               h_last,         # VMEM (Bp, Hp)         scratch: top-layer h
               sem):           # DMA semaphores (batch,)
        j = pl.program_id(0)

        # ---- LSTM single step: only once, on the first vocab tile. ----
        @pl.when(j == 0)
        def _lstm_step():
            # 1) Kick off the embedding row gathers (HBM -> VMEM).
            emb_buf[...] = jnp.zeros_like(emb_buf)       # keep padded rows clean
            copies = []
            for bi in range(batch):                      # real batch rows only
                cp = pltpu.make_async_copy(
                    emb_hbm.at[pl.ds(ids_ref[bi], 1)],   # (1, Ep) table row
                    emb_buf.at[pl.ds(bi, 1)],
                    sem.at[bi])
                cp.start()
                copies.append(cp)

            # 2) One LSTM time step; two matmuls per layer, no staging buffer.
            #    Layer 0's recurrent matmul overlaps the embedding gather.
            x = None
            for l in range(L):
                gh = jnp.dot(h_ref[l], wh_ref[l],
                             preferred_element_type=jnp.float32) + b_ref[l]
                if l == 0:
                    for cp in copies:
                        cp.wait()
                    gx = jnp.dot(emb_buf[...], wx0_ref[...],
                                 preferred_element_type=jnp.float32)
                else:
                    gx = jnp.dot(x, wx_ref[l - 1],
                                 preferred_element_type=jnp.float32)
                gates = gx + gh                          # (Bp, 4Hp), order i,f,o,g
                sig = jax.nn.sigmoid(gates[:, :H3])      # i,f,o only (3Hp lanes)
                g_g = jnp.tanh(gates[:, H3:])            # g only (Hp lanes)
                i_g = sig[:, 0:Hp]
                f_g = sig[:, Hp:2 * Hp]
                o_g = sig[:, 2 * Hp:H3]
                c_new = f_g * c_ref[l] + i_g * g_g
                h_new = o_g * jnp.tanh(c_new)
                h_out_ref[l] = h_new
                c_out_ref[l] = c_new
                x = h_new
            h_last[...] = x

        # ---- Lane-dense, vocab-tiled final projection (every grid step). ----
        pred_ref[...] = (jnp.dot(h_last[...], wfc_ref[...],
                                 preferred_element_type=jnp.float32)
                         + bfc_ref[...])

    return kernel


def decoder_forward(packed, input_ids, hidden, cell):
    """Pallas equivalent of Decoder.forward(input, hidden, cell).

    packed: output of pack_decoder_params (computed once, cached)
    input_ids: (B,) int token ids
    hidden, cell: (L, B, H) float32
    returns: prediction (B, V), hidden (L, B, H), cell (L, B, H)
    """
    d = packed["dims"]
    V, E, H, L = d["V"], d["E"], d["H"], d["L"]
    Ep, Hp, Vp = d["Ep"], d["Hp"], d["Vp"]
    B = int(input_ids.shape[0])
    Bp = _round_up(max(B, 8), 8)
    TILE_V = _pick_tile(Vp)
    nvt = Vp // TILE_V
    Lx = packed["wx"].shape[0]
    w_dtype = packed["wx0"].dtype

    # --- per-step host prep (small: ids clamp + state padding only) ---
    ids = jnp.zeros((Bp,), jnp.int32).at[:B].set(
        jnp.clip(input_ids.astype(jnp.int32), 0, V - 1))
    h_p = jnp.zeros((L, Bp, Hp), jnp.float32).at[:, :B, :H].set(
        hidden.astype(jnp.float32))
    c_p = jnp.zeros((L, Bp, Hp), jnp.float32).at[:, :B, :H].set(
        cell.astype(jnp.float32))

    smem = pl.BlockSpec(memory_space=pltpu.MemorySpace.SMEM)
    hbm = pl.BlockSpec(memory_space=pl.ANY)        # embedding table stays in HBM
    const3 = lambda j: (0, 0, 0)
    const2 = lambda j: (0, 0)

    in_specs = [
        smem,                                              # ids
        pl.BlockSpec((L, Bp, Hp), const3),                 # hidden
        pl.BlockSpec((L, Bp, Hp), const3),                 # cell
        hbm,                                               # embedding table
        pl.BlockSpec((Ep, 4 * Hp), const2),                # wx0
        pl.BlockSpec((Lx, Hp, 4 * Hp), const3),            # wx (layers >= 1)
        pl.BlockSpec((L, Hp, 4 * Hp), const3),             # wh
        pl.BlockSpec((L, 1, 4 * Hp), const3),              # fused bias
        pl.BlockSpec((Hp, TILE_V), lambda j: (0, j)),      # wfc, vocab tiled
        pl.BlockSpec((1, TILE_V), lambda j: (0, j)),       # bfc, vocab tiled
    ]
    out_specs = (
        pl.BlockSpec((Bp, TILE_V), lambda j: (0, j)),      # prediction
        pl.BlockSpec((L, Bp, Hp), const3),                 # h_out
        pl.BlockSpec((L, Bp, Hp), const3),                 # c_out
    )

    # --- scoped-VMEM budget from the actual footprint (v5e default is 16 MiB).
    def nbytes(a):
        return a.size * a.dtype.itemsize
    witem = jnp.dtype(w_dtype).itemsize
    fixed = (4 * nbytes(h_p)                                   # h,c in + out
             + nbytes(packed["wx0"]) + nbytes(packed["wx"])
             + nbytes(packed["wh"]) + nbytes(packed["b"])
             + Bp * Ep * witem + Bp * Hp * 4)                  # scratch
    per_tile = Hp * TILE_V * witem + TILE_V * 4 + Bp * TILE_V * 4
    vmem_limit = int(min(max(fixed + 2 * per_tile + (4 << 20), 16 << 20),
                         64 << 20))

    kernel = _make_decoder_kernel(L, B, Hp)

    pred, h_out, c_out = pl.pallas_call(
        kernel,
        grid=(nvt,),
        out_shape=(jax.ShapeDtypeStruct((Bp, Vp), jnp.float32),
                   jax.ShapeDtypeStruct((L, Bp, Hp), jnp.float32),
                   jax.ShapeDtypeStruct((L, Bp, Hp), jnp.float32)),
        in_specs=in_specs,
        out_specs=out_specs,
        scratch_shapes=[pltpu.VMEM((Bp, Ep), w_dtype),
                        pltpu.VMEM((Bp, Hp), jnp.float32),
                        pltpu.SemaphoreType.DMA((B,))],
        input_output_aliases={1: 1, 2: 2},         # hidden->h_out, cell->c_out
        compiler_params=pltpu.CompilerParams(
            dimension_semantics=("arbitrary",),
            vmem_limit_bytes=vmem_limit),
    )(ids, h_p, c_p, packed["emb"], packed["wx0"], packed["wx"],
      packed["wh"], packed["b"], packed["wfc"], packed["bfc"])

    return pred[:B, :V], h_out[:, :B, :H], c_out[:, :B, :H]


def decoder_reference(params, input_ids, hidden, cell):
    """Pure-JAX reference matching PyTorch nn.Embedding + nn.LSTM(step) + nn.Linear."""
    L, B, H = hidden.shape
    x = params["embedding"][input_ids]          # (B, E)
    h_new, c_new = [], []
    for l in range(L):
        h, c = hidden[l], cell[l]
        gates = (x @ params[f"w_ih_{l}"].T + params[f"b_ih_{l}"]
                 + h @ params[f"w_hh_{l}"].T + params[f"b_hh_{l}"])
        i = jax.nn.sigmoid(gates[:, 0 * H:1 * H])
        f = jax.nn.sigmoid(gates[:, 1 * H:2 * H])
        g = jnp.tanh(gates[:, 2 * H:3 * H])
        o = jax.nn.sigmoid(gates[:, 3 * H:4 * H])
        c2 = f * c + i * g
        h2 = o * jnp.tanh(c2)
        h_new.append(h2)
        c_new.append(c2)
        x = h2
    pred = x @ params["w_fc"].T + params["b_fc"]
    return pred, jnp.stack(h_new), jnp.stack(c_new)


def init_params(key, output_dim, emb_dim, hidden_dim, num_layers):
    params = {}
    k = 1.0 / jnp.sqrt(hidden_dim)
    keys = jax.random.split(key, 2 + 4 * num_layers + 2)
    ki = iter(keys)
    params["embedding"] = jax.random.normal(next(ki), (output_dim, emb_dim),
                                            jnp.float32)
    for l in range(num_layers):
        in_dim = emb_dim if l == 0 else hidden_dim
        params[f"w_ih_{l}"] = jax.random.uniform(
            next(ki), (4 * hidden_dim, in_dim), jnp.float32, -k, k)
        params[f"w_hh_{l}"] = jax.random.uniform(
            next(ki), (4 * hidden_dim, hidden_dim), jnp.float32, -k, k)
        params[f"b_ih_{l}"] = jax.random.uniform(
            next(ki), (4 * hidden_dim,), jnp.float32, -k, k)
        params[f"b_hh_{l}"] = jax.random.uniform(
            next(ki), (4 * hidden_dim,), jnp.float32, -k, k)
    params["w_fc"] = jax.random.uniform(
        next(ki), (output_dim, hidden_dim), jnp.float32, -k, k)
    params["b_fc"] = jax.random.uniform(
        next(ki), (output_dim,), jnp.float32, -k, k)
    return params


if __name__ == "__main__":
    OUTPUT_DIM = 16   # vocab size
    EMB_DIM = 8
    HIDDEN_DIM = 32
    NUM_LAYERS = 2
    BATCH = 2

    key = jax.random.PRNGKey(0)
    kp, ki, kh, kc = jax.random.split(key, 4)

    params = init_params(kp, OUTPUT_DIM, EMB_DIM, HIDDEN_DIM, NUM_LAYERS)
    input_ids = jax.random.randint(ki, (BATCH,), 0, OUTPUT_DIM, jnp.int32)
    hidden = jax.random.normal(kh, (NUM_LAYERS, BATCH, HIDDEN_DIM), jnp.float32)
    cell = jax.random.normal(kc, (NUM_LAYERS, BATCH, HIDDEN_DIM), jnp.float32)

    # Pack / pad weights once (cached in real decode loops).
    packed = pack_decoder_params(params, weight_dtype=jnp.float32)

    pred, h_out, c_out = decoder_forward(packed, input_ids, hidden, cell)
    jax.block_until_ready((pred, h_out, c_out))

    pred_ref, h_ref, c_ref = decoder_reference(params, input_ids, hidden, cell)
    assert pred.shape == (BATCH, OUTPUT_DIM)
    assert h_out.shape == (NUM_LAYERS, BATCH, HIDDEN_DIM)
    assert c_out.shape == (NUM_LAYERS, BATCH, HIDDEN_DIM)
    assert jnp.allclose(pred, pred_ref, atol=1e-4, rtol=1e-4)
    assert jnp.allclose(h_out, h_ref, atol=1e-4, rtol=1e-4)
    assert jnp.allclose(c_out, c_ref, atol=1e-4, rtol=1e-4)

    print("KERNEL_OK")
</pallas_src>

<mosaic_0001>
module attributes {stable_mosaic.version = 11 : i64} {
  func.func @kernel(%arg0: i32, %arg1: memref<8xi32, #tpu.memory_space<smem>>, %arg2: memref<2x8x128xf32, #tpu.memory_space<vmem>>, %arg3: memref<2x8x128xf32, #tpu.memory_space<vmem>>, %arg4: memref<16x128xf32, #tpu.memory_space<any>>, %arg5: memref<128x512xf32, #tpu.memory_space<vmem>>, %arg6: memref<1x128x512xf32, #tpu.memory_space<vmem>>, %arg7: memref<2x128x512xf32, #tpu.memory_space<vmem>>, %arg8: memref<2x1x512xf32, #tpu.memory_space<vmem>>, %arg9: memref<128x128xf32, #tpu.memory_space<vmem>>, %arg10: memref<1x128xf32, #tpu.memory_space<vmem>>, %arg11: memref<8x128xf32, #tpu.memory_space<vmem>>, %arg12: memref<2x8x128xf32, #tpu.memory_space<vmem>>, %arg13: memref<2x8x128xf32, #tpu.memory_space<vmem>>, %arg14: memref<8x128xf32, #tpu.memory_space<vmem>>, %arg15: memref<8x128xf32, #tpu.memory_space<vmem>>, %arg16: memref<2x!tpu.dma_semaphore, #tpu.memory_space<semaphore_mem>>) attributes {dimension_semantics = [#tpu.dimension_semantics<arbitrary>], iteration_bounds = array<i64: 1>, scalar_prefetch = 0 : i64, scratch_operands = 3 : i64, tpu.core_type = #tpu.core_type<tc>, window_params = [{transform_indices = @transform_0, window_bounds = array<i64: 8>}, {pipeline_mode = #tpu.pipeline_mode<synchronous>, transform_indices = @transform_1, window_bounds = array<i64: 2, 8, 128>}, {pipeline_mode = #tpu.pipeline_mode<synchronous>, transform_indices = @transform_2, window_bounds = array<i64: 2, 8, 128>}, {}, {pipeline_mode = #tpu.pipeline_mode<synchronous>, transform_indices = @transform_4, window_bounds = array<i64: 128, 512>}, {pipeline_mode = #tpu.pipeline_mode<synchronous>, transform_indices = @transform_5, window_bounds = array<i64: 1, 128, 512>}, {pipeline_mode = #tpu.pipeline_mode<synchronous>, transform_indices = @transform_6, window_bounds = array<i64: 2, 128, 512>}, {pipeline_mode = #tpu.pipeline_mode<synchronous>, transform_indices = @transform_7, window_bounds = array<i64: 2, 1, 512>}, {transform_indices = @transform_8, window_bounds = array<i64: 128, 128>}, {transform_indices = @transform_9, window_bounds = array<i64: 1, 128>}, {transform_indices = @transform_10, window_bounds = array<i64: 8, 128>}, {pipeline_mode = #tpu.pipeline_mode<synchronous>, transform_indices = @transform_11, window_bounds = array<i64: 2, 8, 128>}, {pipeline_mode = #tpu.pipeline_mode<synchronous>, transform_indices = @transform_12, window_bounds = array<i64: 2, 8, 128>}]} {
    %c0_i32 = arith.constant 0 : i32
    %0 = arith.cmpi eq, %arg0, %c0_i32 : i32
    %1 = arith.extui %0 : i1 to i32
    %c0_i32_0 = arith.constant 0 : i32
    %2 = arith.cmpi ne, %1, %c0_i32_0 : i32
    scf.if %2 {
      %cst_8 = arith.constant 0.000000e+00 : f32
      %10 = vector.broadcast %cst_8 : f32 to vector<8x128xf32>
      %c0_9 = arith.constant 0 : index
      %c0_10 = arith.constant 0 : index
      %11 = vector.load %arg14[%c0_9, %c0_10] : memref<8x128xf32, #tpu.memory_space<vmem>>, vector<8x128xf32>
      tpu.vector_store %arg14[%c0_9, %c0_10], %10 {strides = array<i32>} : memref<8x128xf32, #tpu.memory_space<vmem>>, vector<8x128xf32>,
      %c0_11 = arith.constant 0 : index
      %12 = memref.load %arg1[%c0_11] : memref<8xi32, #tpu.memory_space<smem>>
      %c0_i32_12 = arith.constant 0 : i32
      %c0_i32_13 = arith.constant 0 : i32
      %13 = tpu.memref_slice %arg4[%12, %c0_i32_13] : memref<16x128xf32, #tpu.memory_space<any>> -> memref<1x128xf32, #tpu.memory_space<any>>
      %c0_i32_14 = arith.constant 0 : i32
      %c0_i32_15 = arith.constant 0 : i32
      %14 = tpu.memref_slice %arg14[%c0_i32_14, %c0_i32_15] : memref<8x128xf32, #tpu.memory_space<vmem>> -> memref<1x128xf32, #tpu.memory_space<vmem>>
      %15 = tpu.memref_slice %arg16[%c0_i32_12] : memref<2x!tpu.dma_semaphore, #tpu.memory_space<semaphore_mem>> -> memref<1x!tpu.dma_semaphore, #tpu.memory_space<semaphore_mem>>
      %16 = tpu.memref_squeeze %15 : memref<1x!tpu.dma_semaphore, #tpu.memory_space<semaphore_mem>> -> memref<!tpu.dma_semaphore, #tpu.memory_space<semaphore_mem>>
      tpu.enqueue_dma source(%13 : memref<1x128xf32, #tpu.memory_space<any>>) target(%14 : memref<1x128xf32, #tpu.memory_space<vmem>>) target_semaphore(%16 : memref<!tpu.dma_semaphore, #tpu.memory_space<semaphore_mem>>)
      %c1 = arith.constant 1 : index
      %17 = memref.load %arg1[%c1] : memref<8xi32, #tpu.memory_space<smem>>
      %c1_i32 = arith.constant 1 : i32
      %c0_i32_16 = arith.constant 0 : i32
      %18 = tpu.memref_slice %arg4[%17, %c0_i32_16] : memref<16x128xf32, #tpu.memory_space<any>> -> memref<1x128xf32, #tpu.memory_space<any>>
      %c1_i32_17 = arith.constant 1 : i32
      %c0_i32_18 = arith.constant 0 : i32
      %19 = tpu.memref_slice %arg14[%c1_i32_17, %c0_i32_18] : memref<8x128xf32, #tpu.memory_space<vmem>> -> memref<1x128xf32, #tpu.memory_space<vmem>>
      %20 = tpu.memref_slice %arg16[%c1_i32] : memref<2x!tpu.dma_semaphore, #tpu.memory_space<semaphore_mem>> -> memref<1x!tpu.dma_semaphore, #tpu.memory_space<semaphore_mem>>
      %21 = tpu.memref_squeeze %20 : memref<1x!tpu.dma_semaphore, #tpu.memory_space<semaphore_mem>> -> memref<!tpu.dma_semaphore, #tpu.memory_space<semaphore_mem>>
      tpu.enqueue_dma source(%18 : memref<1x128xf32, #tpu.memory_space<any>>) target(%19 : memref<1x128xf32, #tpu.memory_space<vmem>>) target_semaphore(%21 : memref<!tpu.dma_semaphore, #tpu.memory_space<semaphore_mem>>)
      %c0_19 = arith.constant 0 : index
      %c0_20 = arith.constant 0 : index
      %c0_21 = arith.constant 0 : index
      %22 = vector.load %arg2[%c0_19, %c0_20, %c0_21] : memref<2x8x128xf32, #tpu.memory_space<vmem>>, vector<1x8x128xf32>
      %23 = vector.shape_cast %22 : vector<1x8x128xf32> to vector<8x128xf32>
      %c0_22 = arith.constant 0 : index
      %c0_23 = arith.constant 0 : index
      %c0_24 = arith.constant 0 : index
      %24 = vector.load %arg7[%c0_22, %c0_23, %c0_24] : memref<2x128x512xf32, #tpu.memory_space<vmem>>, vector<1x128x512xf32>
      %25 = vector.shape_cast %24 : vector<1x128x512xf32> to vector<128x512xf32>
      %cst_25 = arith.constant dense<0.000000e+00> : vector<8x512xf32>
      %26 = tpu.matmul %23, %25, %cst_25 {dimension_numbers = #tpu.dot_dimension_numbers<[1], [0], [0], [1], [0, 0, 1, 1], [], []>} : vector<8x128xf32>, vector<128x512xf32>, vector<8x512xf32> -> vector<8x512xf32>
      %c0_26 = arith.constant 0 : index
      %c0_27 = arith.constant 0 : index
      %c0_28 = arith.constant 0 : index
      %27 = vector.load %arg8[%c0_26, %c0_27, %c0_28] : memref<2x1x512xf32, #tpu.memory_space<vmem>>, vector<1x1x512xf32>
      %28 = vector.shape_cast %27 : vector<1x1x512xf32> to vector<1x512xf32>
      %29 = vector.broadcast %28 : vector<1x512xf32> to vector<8x512xf32>
      %30 = arith.addf %26, %29 : vector<8x512xf32>
      %c0_i32_29 = arith.constant 0 : i32
      %c0_i32_30 = arith.constant 0 : i32
      %31 = tpu.memref_slice %arg4[%12, %c0_i32_30] : memref<16x128xf32, #tpu.memory_space<any>> -> memref<1x128xf32, #tpu.memory_space<any>>
      %c0_i32_31 = arith.constant 0 : i32
      %c0_i32_32 = arith.constant 0 : i32
      %32 = tpu.memref_slice %arg14[%c0_i32_31, %c0_i32_32] : memref<8x128xf32, #tpu.memory_space<vmem>> -> memref<1x128xf32, #tpu.memory_space<vmem>>
      %33 = tpu.memref_slice %arg16[%c0_i32_29] : memref<2x!tpu.dma_semaphore, #tpu.memory_space<semaphore_mem>> -> memref<1x!tpu.dma_semaphore, #tpu.memory_space<semaphore_mem>>
      %34 = tpu.memref_squeeze %33 : memref<1x!tpu.dma_semaphore, #tpu.memory_space<semaphore_mem>> -> memref<!tpu.dma_semaphore, #tpu.memory_space<semaphore_mem>>
      tpu.wait_dma2 semaphore(%34 : memref<!tpu.dma_semaphore, #tpu.memory_space<semaphore_mem>>) src(%31 : memref<1x128xf32, #tpu.memory_space<any>>) dst(%32 : memref<1x128xf32, #tpu.memory_space<vmem>>)
      %c1_i32_33 = arith.constant 1 : i32
      %c0_i32_34 = arith.constant 0 : i32
      %35 = tpu.memref_slice %arg4[%17, %c0_i32_34] : memref<16x128xf32, #tpu.memory_space<any>> -> memref<1x128xf32, #tpu.memory_space<any>>
      %c1_i32_35 = arith.constant 1 : i32
      %c0_i32_36 = arith.constant 0 : i32
      %36 = tpu.memref_slice %arg14[%c1_i32_35, %c0_i32_36] : memref<8x128xf32, #tpu.memory_space<vmem>> -> memref<1x128xf32, #tpu.memory_space<vmem>>
      %37 = tpu.memref_slice %arg16[%c1_i32_33] : memref<2x!tpu.dma_semaphore, #tpu.memory_space<semaphore_mem>> -> memref<1x!tpu.dma_semaphore, #tpu.memory_space<semaphore_mem>>
      %38 = tpu.memref_squeeze %37 : memref<1x!tpu.dma_semaphore, #tpu.memory_space<semaphore_mem>> -> memref<!tpu.dma_semaphore, #tpu.memory_space<semaphore_mem>>
      tpu.wait_dma2 semaphore(%38 : memref<!tpu.dma_semaphore, #tpu.memory_space<semaphore_mem>>) src(%35 : memref<1x128xf32, #tpu.memory_space<any>>) dst(%36 : memref<1x128xf32, #tpu.memory_space<vmem>>)
      %c0_37 = arith.constant 0 : index
      %c0_38 = arith.constant 0 : index
      %39 = vector.load %arg14[%c0_37, %c0_38] : memref<8x128xf32, #tpu.memory_space<vmem>>, vector<8x128xf32>
      %c0_39 = arith.constant 0 : index
      %c0_40 = arith.constant 0 : index
      %40 = vector.load %arg5[%c0_39, %c0_40] : memref<128x512xf32, #tpu.memory_space<vmem>>, vector<128x512xf32>
      %cst_41 = arith.constant dense<0.000000e+00> : vector<8x512xf32>
      %41 = tpu.matmul %39, %40, %cst_41 {dimension_numbers = #tpu.dot_dimension_numbers<[1], [0], [0], [1], [0, 0, 1, 1], [], []>} : vector<8x128xf32>, vector<128x512xf32>, vector<8x512xf32> -> vector<8x512xf32>
      %42 = arith.addf %41, %30 : vector<8x512xf32>
      %43 = vector.extract_strided_slice %42 {offsets = [0, 0], sizes = [8, 384], strides = [1, 1]} : vector<8x512xf32> to vector<8x384xf32>
      %44 = arith.negf %43 : vector<8x384xf32>
      %45 = math.exp %44 : vector<8x384xf32>
      %cst_42 = arith.constant 1.000000e+00 : f32
      %46 = vector.broadcast %cst_42 : f32 to vector<8x384xf32>
      %47 = arith.addf %46, %45 : vector<8x384xf32>
      %48 = arith.divf %46, %47 : vector<8x384xf32>
      %49 = vector.extract_strided_slice %42 {offsets = [0, 384], sizes = [8, 128], strides = [1, 1]} : vector<8x512xf32> to vector<8x128xf32>
      %50 = math.tanh %49 : vector<8x128xf32>
      %51 = vector.extract_strided_slice %48 {offsets = [0, 0], sizes = [8, 128], strides = [1, 1]} : vector<8x384xf32> to vector<8x128xf32>
      %52 = vector.extract_strided_slice %48 {offsets = [0, 128], sizes = [8, 128], strides = [1, 1]} : vector<8x384xf32> to vector<8x128xf32>
      %53 = vector.extract_strided_slice %48 {offsets = [0, 256], sizes = [8, 128], strides = [1, 1]} : vector<8x384xf32> to vector<8x128xf32>
      %c0_43 = arith.constant 0 : index
      %c0_44 = arith.constant 0 : index
      %c0_45 = arith.constant 0 : index
      %54 = vector.load %arg3[%c0_43, %c0_44, %c0_45] : memref<2x8x128xf32, #tpu.memory_space<vmem>>, vector<1x8x128xf32>
      %55 = vector.shape_cast %54 : vector<1x8x128xf32> to vector<8x128xf32>
      %56 = arith.mulf %52, %55 : vector<8x128xf32>
      %57 = arith.mulf %51, %50 : vector<8x128xf32>
      %58 = arith.addf %56, %57 : vector<8x128xf32>
      %59 = math.tanh %58 : vector<8x128xf32>
      %60 = arith.mulf %53, %59 : vector<8x128xf32>
      %c0_46 = arith.constant 0 : index
      %c0_47 = arith.constant 0 : index
      %c0_48 = arith.constant 0 : index
      %61 = vector.load %arg12[%c0_46, %c0_47, %c0_48] : memref<2x8x128xf32, #tpu.memory_space<vmem>>, vector<1x8x128xf32>
      %62 = vector.shape_cast %61 : vector<1x8x128xf32> to vector<8x128xf32>
      %63 = vector.shape_cast %60 : vector<8x128xf32> to vector<1x8x128xf32>
      tpu.vector_store %arg12[%c0_46, %c0_47, %c0_48], %63 {strides = array<i32>} : memref<2x8x128xf32, #tpu.memory_space<vmem>>, vector<1x8x128xf32>,
      %c0_49 = arith.constant 0 : index
      %c0_50 = arith.constant 0 : index
      %c0_51 = arith.constant 0 : index
      %64 = vector.load %arg13[%c0_49, %c0_50, %c0_51] : memref<2x8x128xf32, #tpu.memory_space<vmem>>, vector<1x8x128xf32>
      %65 = vector.shape_cast %64 : vector<1x8x128xf32> to vector<8x128xf32>
      %66 = vector.shape_cast %58 : vector<8x128xf32> to vector<1x8x128xf32>
      tpu.vector_store %arg13[%c0_49, %c0_50, %c0_51], %66 {strides = array<i32>} : memref<2x8x128xf32, #tpu.memory_space<vmem>>, vector<1x8x128xf32>,
      %c1_52 = arith.constant 1 : index
      %c0_53 = arith.constant 0 : index
      %c0_54 = arith.constant 0 : index
      %67 = vector.load %arg2[%c1_52, %c0_53, %c0_54] : memref<2x8x128xf32, #tpu.memory_space<vmem>>, vector<1x8x128xf32>
      %68 = vector.shape_cast %67 : vector<1x8x128xf32> to vector<8x128xf32>
      %c1_55 = arith.constant 1 : index
      %c0_56 = arith.constant 0 : index
      %c0_57 = arith.constant 0 : index
      %69 = vector.load %arg7[%c1_55, %c0_56, %c0_57] : memref<2x128x512xf32, #tpu.memory_space<vmem>>, vector<1x128x512xf32>
      %70 = vector.shape_cast %69 : vector<1x128x512xf32> to vector<128x512xf32>
      %cst_58 = arith.constant dense<0.000000e+00> : vector<8x512xf32>
      %71 = tpu.matmul %68, %70, %cst_58 {dimension_numbers = #tpu.dot_dimension_numbers<[1], [0], [0], [1], [0, 0, 1, 1], [], []>} : vector<8x128xf32>, vector<128x512xf32>, vector<8x512xf32> -> vector<8x512xf32>
      %c1_59 = arith.constant 1 : index
      %c0_60 = arith.constant 0 : index
      %c0_61 = arith.constant 0 : index
      %72 = vector.load %arg8[%c1_59, %c0_60, %c0_61] : memref<2x1x512xf32, #tpu.memory_space<vmem>>, vector<1x1x512xf32>
      %73 = vector.shape_cast %72 : vector<1x1x512xf32> to vector<1x512xf32>
      %74 = vector.broadcast %73 : vector<1x512xf32> to vector<8x512xf32>
      %75 = arith.addf %71, %74 : vector<8x512xf32>
      %c0_62 = arith.constant 0 : index
      %c0_63 = arith.constant 0 : index
      %c0_64 = arith.constant 0 : index
      %76 = vector.load %arg6[%c0_62, %c0_63, %c0_64] : memref<1x128x512xf32, #tpu.memory_space<vmem>>, vector<1x128x512xf32>
      %77 = vector.shape_cast %76 : vector<1x128x512xf32> to vector<128x512xf32>
      %cst_65 = arith.constant dense<0.000000e+00> : vector<8x512xf32>
      %78 = tpu.matmul %60, %77, %cst_65 {dimension_numbers = #tpu.dot_dimension_numbers<[1], [0], [0], [1], [0, 0, 1, 1], [], []>} : vector<8x128xf32>, vector<128x512xf32>, vector<8x512xf32> -> vector<8x512xf32>
      %79 = arith.addf %78, %75 : vector<8x512xf32>
      %80 = vector.extract_strided_slice %79 {offsets = [0, 0], sizes = [8, 384], strides = [1, 1]} : vector<8x512xf32> to vector<8x384xf32>
      %81 = arith.negf %80 : vector<8x384xf32>
      %82 = math.exp %81 : vector<8x384xf32>
      %cst_66 = arith.constant 1.000000e+00 : f32
      %83 = vector.broadcast %cst_66 : f32 to vector<8x384xf32>
      %84 = arith.addf %83, %82 : vector<8x384xf32>
      %85 = arith.divf %83, %84 : vector<8x384xf32>
      %86 = vector.extract_strided_slice %79 {offsets = [0, 384], sizes = [8, 128], strides = [1, 1]} : vector<8x512xf32> to vector<8x128xf32>
      %87 = math.tanh %86 : vector<8x128xf32>
      %88 = vector.extract_strided_slice %85 {offsets = [0, 0], sizes = [8, 128], strides = [1, 1]} : vector<8x384xf32> to vector<8x128xf32>
      %89 = vector.extract_strided_slice %85 {offsets = [0, 128], sizes = [8, 128], strides = [1, 1]} : vector<8x384xf32> to vector<8x128xf32>
      %90 = vector.extract_strided_slice %85 {offsets = [0, 256], sizes = [8, 128], strides = [1, 1]} : vector<8x384xf32> to vector<8x128xf32>
      %c1_67 = arith.constant 1 : index
      %c0_68 = arith.constant 0 : index
      %c0_69 = arith.constant 0 : index
      %91 = vector.load %arg3[%c1_67, %c0_68, %c0_69] : memref<2x8x128xf32, #tpu.memory_space<vmem>>, vector<1x8x128xf32>
      %92 = vector.shape_cast %91 : vector<1x8x128xf32> to vector<8x128xf32>
      %93 = arith.mulf %89, %92 : vector<8x128xf32>
      %94 = arith.mulf %88, %87 : vector<8x128xf32>
      %95 = arith.addf %93, %94 : vector<8x128xf32>
      %96 = math.tanh %95 : vector<8x128xf32>
      %97 = arith.mulf %90, %96 : vector<8x128xf32>
      %c1_70 = arith.constant 1 : index
      %c0_71 = arith.constant 0 : index
      %c0_72 = arith.constant 0 : index
      %98 = vector.load %arg12[%c1_70, %c0_71, %c0_72] : memref<2x8x128xf32, #tpu.memory_space<vmem>>, vector<1x8x128xf32>
      %99 = vector.shape_cast %98 : vector<1x8x128xf32> to vector<8x128xf32>
      %100 = vector.shape_cast %97 : vector<8x128xf32> to vector<1x8x128xf32>
      tpu.vector_store %arg12[%c1_70, %c0_71, %c0_72], %100 {strides = array<i32>} : memref<2x8x128xf32, #tpu.memory_space<vmem>>, vector<1x8x128xf32>,
      %c1_73 = arith.constant 1 : index
      %c0_74 = arith.constant 0 : index
      %c0_75 = arith.constant 0 : index
      %101 = vector.load %arg13[%c1_73, %c0_74, %c0_75] : memref<2x8x128xf32, #tpu.memory_space<vmem>>, vector<1x8x128xf32>
      %102 = vector.shape_cast %101 : vector<1x8x128xf32> to vector<8x128xf32>
      %103 = vector.shape_cast %95 : vector<8x128xf32> to vector<1x8x128xf32>
      tpu.vector_store %arg13[%c1_73, %c0_74, %c0_75], %103 {strides = array<i32>} : memref<2x8x128xf32, #tpu.memory_space<vmem>>, vector<1x8x128xf32>,
      %c0_76 = arith.constant 0 : index
      %c0_77 = arith.constant 0 : index
      %104 = vector.load %arg15[%c0_76, %c0_77] : memref<8x128xf32, #tpu.memory_space<vmem>>, vector<8x128xf32>
      tpu.vector_store %arg15[%c0_76, %c0_77], %97 {strides = array<i32>} : memref<8x128xf32, #tpu.memory_space<vmem>>, vector<8x128xf32>,
    } else {
    }
    %c0 = arith.constant 0 : index
    %c0_1 = arith.constant 0 : index
    %3 = vector.load %arg15[%c0, %c0_1] : memref<8x128xf32, #tpu.memory_space<vmem>>, vector<8x128xf32>
    %c0_2 = arith.constant 0 : index
    %c0_3 = arith.constant 0 : index
    %4 = vector.load %arg9[%c0_2, %c0_3] : memref<128x128xf32, #tpu.memory_space<vmem>>, vector<128x128xf32>
    %cst = arith.constant dense<0.000000e+00> : vector<8x128xf32>
    %5 = tpu.matmul %3, %4, %cst {dimension_numbers = #tpu.dot_dimension_numbers<[1], [0], [0], [1], [0, 0, 1, 1], [], []>} : vector<8x128xf32>, vector<128x128xf32>, vector<8x128xf32> -> vector<8x128xf32>
    %c0_4 = arith.constant 0 : index
    %c0_5 = arith.constant 0 : index
    %6 = vector.load %arg10[%c0_4, %c0_5] : memref<1x128xf32, #tpu.memory_space<vmem>>, vector<1x128xf32>
    %7 = vector.broadcast %6 : vector<1x128xf32> to vector<8x128xf32>
    %8 = arith.addf %5, %7 : vector<8x128xf32>
    %c0_6 = arith.constant 0 : index
    %c0_7 = arith.constant 0 : index
    %9 = vector.load %arg11[%c0_6, %c0_7] : memref<8x128xf32, #tpu.memory_space<vmem>>, vector<8x128xf32>
    tpu.vector_store %arg11[%c0_6, %c0_7], %8 {strides = array<i32>} : memref<8x128xf32, #tpu.memory_space<vmem>>, vector<8x128xf32>,
    return
  }
  func.func @transform_0(%arg0: i32) -> i32 {
    %c0_i32 = arith.constant 0 : i32
    %c0_i32_0 = arith.constant 0 : i32
    return %c0_i32 : i32
  }
  func.func @transform_1(%arg0: i32) -> (i32, i32, i32) {
    %c0_i32 = arith.constant 0 : i32
    %c0_i32_0 = arith.constant 0 : i32
    %c0_i32_1 = arith.constant 0 : i32
    %c0_i32_2 = arith.constant 0 : i32
    return %c0_i32, %c0_i32_0, %c0_i32_1 : i32, i32, i32
  }
  func.func @transform_2(%arg0: i32) -> (i32, i32, i32) {
    %c0_i32 = arith.constant 0 : i32
    %c0_i32_0 = arith.constant 0 : i32
    %c0_i32_1 = arith.constant 0 : i32
    %c0_i32_2 = arith.constant 0 : i32
    return %c0_i32, %c0_i32_0, %c0_i32_1 : i32, i32, i32
  }
  func.func @transform_4(%arg0: i32) -> (i32, i32) {
    %c0_i32 = arith.constant 0 : i32
    %c0_i32_0 = arith.constant 0 : i32
    %c0_i32_1 = arith.constant 0 : i32
    return %c0_i32, %c0_i32_0 : i32, i32
  }
  func.func @transform_5(%arg0: i32) -> (i32, i32, i32) {
    %c0_i32 = arith.constant 0 : i32
    %c0_i32_0 = arith.constant 0 : i32
    %c0_i32_1 = arith.constant 0 : i32
    %c0_i32_2 = arith.constant 0 : i32
    return %c0_i32, %c0_i32_0, %c0_i32_1 : i32, i32, i32
  }
  func.func @transform_6(%arg0: i32) -> (i32, i32, i32) {
    %c0_i32 = arith.constant 0 : i32
    %c0_i32_0 = arith.constant 0 : i32
    %c0_i32_1 = arith.constant 0 : i32
    %c0_i32_2 = arith.constant 0 : i32
    return %c0_i32, %c0_i32_0, %c0_i32_1 : i32, i32, i32
  }
  func.func @transform_7(%arg0: i32) -> (i32, i32, i32) {
    %c0_i32 = arith.constant 0 : i32
    %c0_i32_0 = arith.constant 0 : i32
    %c0_i32_1 = arith.constant 0 : i32
    %c0_i32_2 = arith.constant 0 : i32
    return %c0_i32, %c0_i32_0, %c0_i32_1 : i32, i32, i32
  }
  func.func @transform_8(%arg0: i32) -> (i32, i32) {
    %c0_i32 = arith.constant 0 : i32
    %c0_i32_0 = arith.constant 0 : i32
    return %c0_i32, %arg0 : i32, i32
  }
  func.func @transform_9(%arg0: i32) -> (i32, i32) {
    %c0_i32 = arith.constant 0 : i32
    %c0_i32_0 = arith.constant 0 : i32
    return %c0_i32, %arg0 : i32, i32
  }
  func.func @transform_10(%arg0: i32) -> (i32, i32) {
    %c0_i32 = arith.constant 0 : i32
    %c0_i32_0 = arith.constant 0 : i32
    return %c0_i32, %arg0 : i32, i32
  }
  func.func @transform_11(%arg0: i32) -> (i32, i32, i32) {
    %c0_i32 = arith.constant 0 : i32
    %c0_i32_0 = arith.constant 0 : i32
    %c0_i32_1 = arith.constant 0 : i32
    %c0_i32_2 = arith.constant 0 : i32
    return %c0_i32, %c0_i32_0, %c0_i32_1 : i32, i32, i32
  }
  func.func @transform_12(%arg0: i32) -> (i32, i32, i32) {
    %c0_i32 = arith.constant 0 : i32
    %c0_i32_0 = arith.constant 0 : i32
    %c0_i32_1 = arith.constant 0 : i32
    %c0_i32_2 = arith.constant 0 : i32
    return %c0_i32, %c0_i32_0, %c0_i32_1 : i32, i32, i32
  }
}

</mosaic_0001>

<llo_original>
// kernel: tpu_custom_call.1
$region0: #{tpu_custom_call.1}
  #allocation0 [shape = 'u32[]', space=smem, size = 0x4, offset = 0x4, fixed_abs, tag = 'smem constant byte address 0x4 - core index']
  #allocation1 [shape = 'u32[72,128]{1,0:T(1,128)}', space=vmem, size = 0x9000, scoped, tag = 'internal scratch']
  #allocation2 [shape = 'f32[8,128]{1,0:T(8,128)}', space=vmem, size = 0x1000, scoped, tag = 'scratch operand']
  #allocation3 [shape = 'f32[8,128]{1,0:T(8,128)}', space=vmem, size = 0x1000, scoped, tag = 'scratch operand']
  #allocation4 [shape = 's32[2]{0}', space=sflag, size = 0x8, scoped, tag = 'scratch operand']
  #allocation22 [shape = 's32[]', space=sflag, size = 0x4, offset = 0, fixed_abs, tag = 'sflag constant byte address 0x0 - dummy sync flag']
  #allocation23 [shape = 's32[]', space=sflag, size = 0x4, offset = 0, fixed_abs, tag = 'sflag constant byte address 0x0 - dummy sync flag']
  %s0 = inlined_call_operand.vmem [shape: s32[8], index: 0, kind: input, shape index: {}]
  %s1 = inlined_call_operand.hbm [shape: f32[2,8,128], index: 1, kind: input, shape index: {}, may-alias: {1,11}]
  %s2 = inlined_call_operand.hbm [shape: f32[2,8,128], index: 2, kind: input, shape index: {}, may-alias: {2,12}]
  %s3 = inlined_call_operand.vmem [shape: f32[16,128], index: 3, kind: input, shape index: {}]
  %s4 = inlined_call_operand.hbm [shape: f32[128,512], index: 4, kind: input, shape index: {}]
  %s5 = inlined_call_operand.hbm [shape: f32[1,128,512], index: 5, kind: input, shape index: {}]
  %s6 = inlined_call_operand.hbm [shape: f32[2,128,512], index: 6, kind: input, shape index: {}]
  %s7 = inlined_call_operand.vmem [shape: f32[2,1,512], index: 7, kind: input, shape index: {}]
  %s8 = inlined_call_operand.hbm [shape: f32[128,128], index: 8, kind: input, shape index: {}]
  %s9 = inlined_call_operand.vmem [shape: f32[1,128], index: 9, kind: input, shape index: {}]
  %s10 = inlined_call_operand.hbm [shape: f32[8,128], index: 10, kind: output, shape index: {0}]
  %s11 = inlined_call_operand.hbm [shape: f32[2,8,128], index: 11, kind: output, shape index: {1}, may-alias: {1,11}]
  %s12 = inlined_call_operand.hbm [shape: f32[2,8,128], index: 12, kind: output, shape index: {2}, may-alias: {2,12}]
  %13 = xla_tuple %s10, %s11, %s12
  %s14 = sld [smem:[#allocation0]]
  $region154: #{tpu_custom_call.1} parent=0
    _
  %s16 = ssub.s32 1, %s14
  %s17 = scalar_select 0, %s16, %s14
  $region1: #{tpu_custom_call.1} parent=0
    #allocation5 [shape = 'u8[512]{0}', space=smem, size = 0x200, scoped, tag = 'input window, operand 0, single buffered']
    #allocation6 [shape = 's32[1]{0}', space=sflag, size = 0x4, scoped, tag = 'scoped memory for tpu_custom_call.1']
    #allocation7 [shape = 's32[1]{0}', space=sflag, size = 0x4, scoped, tag = 'scoped memory for tpu_custom_call.1']
    #allocation8 [shape = 's32[1]{0}', space=sflag, size = 0x4, scoped, tag = 'scoped memory for tpu_custom_call.1']
    #allocation9 [shape = 'u8[8192]{0}', space=vmem, size = 0x2000, scoped, tag = 'input window, operand 1, single buffered']
    #allocation10 [shape = 'u8[8192]{0}', space=vmem, size = 0x2000, scoped, tag = 'input window, operand 2, single buffered']
    #allocation11 [shape = 's32[1]{0}', space=sflag, size = 0x4, scoped, tag = 'scoped memory for tpu_custom_call.1']
    #allocation12 [shape = 'u8[262144]{0}', space=vmem, size = 0x40000, scoped, tag = 'input window, operand 4, single buffered']
    #allocation13 [shape = 'u8[262144]{0}', space=vmem, size = 0x40000, scoped, tag = 'input window, operand 5, single buffered']
    #allocation14 [shape = 's32[1]{0}', space=sflag, size = 0x4, scoped, tag = 'scoped memory for tpu_custom_call.1']
    #allocation15 [shape = 'u8[524288]{0}', space=vmem, size = 0x80000, scoped, tag = 'input window, operand 6, single buffered']
    #allocation16 [shape = 'u8[65536]{0}', space=vmem, size = 0x10000, scoped, tag = 'input window, operand 8, single buffered']
    #allocation17 [shape = 's32[1]{0}', space=sflag, size = 0x4, scoped, tag = 'scoped memory for tpu_custom_call.1']
    #allocation18 [shape = 'u8[4096]{0}', space=vmem, size = 0x1000, scoped, tag = 'output window, operand 0, single buffered']
    #allocation19 [shape = 'u8[8192]{0}', space=vmem, size = 0x2000, scoped, tag = 'output window, operand 1, single buffered']
    #allocation20 [shape = 's32[1]{0}', space=sflag, size = 0x4, scoped, tag = 'scoped memory for tpu_custom_call.1']
    #allocation21 [shape = 'u8[8192]{0}', space=vmem, size = 0x2000, scoped, tag = 'output window, operand 2, single buffered']
    %18 = vsyncpa [#allocation8], 0
    %19 = vsyncpa [#allocation6], 0
    %20 = vsyncpa [#allocation11], 0
    %21 = vsyncpa [#allocation14], 0
    %22 = vsyncpa [#allocation17], 0
    %23 = vsyncpa [#allocation7], 0
    %24 = vsyncpa [#allocation20], 0
    // Predicated region
    $region2: #{tpu_custom_call.1} parent=1 // pred_check
      _
    $region3: #{tpu_custom_call.1} parent=1 // pred_check_branch
      %26 = sbr.rel (0) target = $region5
    $region4: #{tpu_custom_call.1} parent=1 // pred_region
      %28 = vsyncadd [#allocation8], 0
      %s30 = sshll.u32 %s0, 4
      %s31 = int_to_ptr.vmem [resolvable:$true] %s30
      %33 = dma.vmem_to_smem %s31, 16, [#allocation5], [#allocation8]
    $region5: #{tpu_custom_call.1} parent=1 // pred_fallthru
      _
    // Predicated region
    $region6: #{tpu_custom_call.1} parent=1 // pred_check
      _
    $region7: #{tpu_custom_call.1} parent=1 // pred_check_branch
      %35 = sbr.rel (0) target = $region9
    $region8: #{tpu_custom_call.1} parent=1 // pred_region
      %37 = vsyncadd [#allocation6], 0
      %s38 = sshll.u32 %s1, 4
      %s39 = int_to_ptr.hbm [resolvable:$true] %s38
      %s40 = sshll.u32 [#allocation9], 4
      %s41 = int_to_ptr.vmem [resolvable:$true] %s40
      %46 = dma.hbm_to_vmem [thread:$0]  %s39, 256, %s41, [#allocation6], 128, 128, 8
    $region9: #{tpu_custom_call.1} parent=1 // pred_fallthru
      _
    // Predicated region
    $region10: #{tpu_custom_call.1} parent=1 // pred_check
      _
    $region11: #{tpu_custom_call.1} parent=1 // pred_check_branch
      %48 = sbr.rel (0) target = $region13
    $region12: #{tpu_custom_call.1} parent=1 // pred_region
      %50 = vsyncadd [#allocation11], 0
      %s51 = sshll.u32 %s2, 4
      %s52 = int_to_ptr.hbm [resolvable:$true] %s51
      %s53 = sshll.u32 [#allocation10], 4
      %s54 = int_to_ptr.vmem [resolvable:$true] %s53
      %59 = dma.hbm_to_vmem [thread:$0]  %s52, 256, %s54, [#allocation11], 128, 128, 8
    $region13: #{tpu_custom_call.1} parent=1 // pred_fallthru
      _
    // Predicated region
    $region14: #{tpu_custom_call.1} parent=1 // pred_check
      _
    $region15: #{tpu_custom_call.1} parent=1 // pred_check_branch
      %61 = sbr.rel (0) target = $region17
    $region16: #{tpu_custom_call.1} parent=1 // pred_region
      %63 = vsyncadd [#allocation11], 0
      %s64 = sshll.u32 %s4, 4
      %s65 = int_to_ptr.hbm [resolvable:$true] %s64
      %s66 = sshll.u32 [#allocation12], 4
      %s67 = int_to_ptr.vmem [resolvable:$true] %s66
      %72 = dma.hbm_to_vmem [thread:$0]  %s65, 8192, %s67, [#allocation11], 512, 512, 32
    $region17: #{tpu_custom_call.1} parent=1 // pred_fallthru
      _
    // Predicated region
    $region18: #{tpu_custom_call.1} parent=1 // pred_check
      _
    $region19: #{tpu_custom_call.1} parent=1 // pred_check_branch
      %74 = sbr.rel (0) target = $region21
    $region20: #{tpu_custom_call.1} parent=1 // pred_region
      %76 = vsyncadd [#allocation14], 0
      %s77 = sshll.u32 %s5, 4
      %s78 = int_to_ptr.hbm [resolvable:$true] %s77
      %s79 = sshll.u32 [#allocation13], 4
      %s80 = int_to_ptr.vmem [resolvable:$true] %s79
      %85 = dma.hbm_to_vmem [thread:$0]  %s78, 8192, %s80, [#allocation14], 512, 512, 32
    $region21: #{tpu_custom_call.1} parent=1 // pred_fallthru
      _
    // Predicated region
    $region22: #{tpu_custom_call.1} parent=1 // pred_check
      _
    $region23: #{tpu_custom_call.1} parent=1 // pred_check_branch
      %87 = sbr.rel (0) target = $region25
    $region24: #{tpu_custom_call.1} parent=1 // pred_region
      %89 = vsyncadd [#allocation14], 0
      %s90 = sshll.u32 %s6, 4
      %s91 = int_to_ptr.hbm [resolvable:$true] %s90
      %s92 = sshll.u32 [#allocation15], 4
      %s93 = int_to_ptr.vmem [resolvable:$true] %s92
      %98 = dma.hbm_to_vmem [thread:$0]  %s91, 16384, %s93, [#allocation14], 512, 512, 32
    $region25: #{tpu_custom_call.1} parent=1 // pred_fallthru
      _
    // Predicated region
    $region26: #{tpu_custom_call.1} parent=1 // pred_check
      _
    $region27: #{tpu_custom_call.1} parent=1 // pred_check_branch
      %100 = sbr.rel (0) target = $region29
    $region28: #{tpu_custom_call.1} parent=1 // pred_region
      _
    $region29: #{tpu_custom_call.1} parent=1 // pred_fallthru
      _
    // Predicated region
    $region30: #{tpu_custom_call.1} parent=1 // pred_check
      _
    $region31: #{tpu_custom_call.1} parent=1 // pred_check_branch
      %102 = sbr.rel (0) target = $region33
    $region32: #{tpu_custom_call.1} parent=1 // pred_region
      %104 = vsyncadd [#allocation17], 0
      %s105 = sshll.u32 %s8, 4
      %s106 = int_to_ptr.hbm [resolvable:$true] %s105
      %s107 = sshll.u32 [#allocation16], 4
      %s108 = int_to_ptr.vmem [resolvable:$true] %s107
      %113 = dma.hbm_to_vmem [thread:$0]  %s106, 2048, %s108, [#allocation17], 128, 128, 8
    $region33: #{tpu_custom_call.1} parent=1 // pred_fallthru
      _
    // Predicated region
    $region34: #{tpu_custom_call.1} parent=1 // pred_check
      _
    $region35: #{tpu_custom_call.1} parent=1 // pred_check_branch
      %115 = sbr.rel (0) target = $region37
    $region36: #{tpu_custom_call.1} parent=1 // pred_region
      _
    $region37: #{tpu_custom_call.1} parent=1 // pred_fallthru
      _
    // Predicated region
    $region38: #{tpu_custom_call.1} parent=1 // pred_check
      _
    $region39: #{tpu_custom_call.1} parent=1 // pred_check_branch
      %117 = sbr.rel (0) target = $region41
    $region40: #{tpu_custom_call.1} parent=1 // pred_region
      %119 = dma.done [#allocation8], 16
    $region41: #{tpu_custom_call.1} parent=1 // pred_fallthru
      _
    // Predicated region
    $region42: #{tpu_custom_call.1} parent=1 // pred_check
      _
    $region43: #{tpu_custom_call.1} parent=1 // pred_check_branch
      %121 = sbr.rel (0) target = $region45
    $region44: #{tpu_custom_call.1} parent=1 // pred_region
      %123 = dma.done [#allocation6], 256
    $region45: #{tpu_custom_call.1} parent=1 // pred_fallthru
      _
    // Predicated region
    $region46: #{tpu_custom_call.1} parent=1 // pred_check
      _
    $region47: #{tpu_custom_call.1} parent=1 // pred_check_branch
      %125 = sbr.rel (0) target = $region49
    $region48: #{tpu_custom_call.1} parent=1 // pred_region
      %127 = dma.done [#allocation11], 256
    $region49: #{tpu_custom_call.1} parent=1 // pred_fallthru
      _
    // Predicated region
    $region50: #{tpu_custom_call.1} parent=1 // pred_check
      _
    $region51: #{tpu_custom_call.1} parent=1 // pred_check_branch
      %129 = sbr.rel (0) target = $region53
    $region52: #{tpu_custom_call.1} parent=1 // pred_region
      %131 = dma.done [#allocation11], 8192
    $region53: #{tpu_custom_call.1} parent=1 // pred_fallthru
      _
    // Predicated region
    $region54: #{tpu_custom_call.1} parent=1 // pred_check
      _
    $region55: #{tpu_custom_call.1} parent=1 // pred_check_branch
      %133 = sbr.rel (0) target = $region57
    $region56: #{tpu_custom_call.1} parent=1 // pred_region
      %135 = dma.done [#allocation14], 8192
    $region57: #{tpu_custom_call.1} parent=1 // pred_fallthru
      _
    // Predicated region
    $region58: #{tpu_custom_call.1} parent=1 // pred_check
      _
    $region59: #{tpu_custom_call.1} parent=1 // pred_check_branch
      %137 = sbr.rel (0) target = $region61
    $region60: #{tpu_custom_call.1} parent=1 // pred_region
      %139 = dma.done [#allocation14], 16384
    $region61: #{tpu_custom_call.1} parent=1 // pred_fallthru
      _
    // Predicated region
    $region62: #{tpu_custom_call.1} parent=1 // pred_check
      _
    $region63: #{tpu_custom_call.1} parent=1 // pred_check_branch
      %141 = sbr.rel (0) target = $region65
    $region64: #{tpu_custom_call.1} parent=1 // pred_region
      %143 = dma.done [#allocation17], 2048
    $region65: #{tpu_custom_call.1} parent=1 // pred_fallthru
      _
    %144 = sfence
    %p145 = scmp.eq.s32.totalorder 0, 0
    // Predicated region
    $region66: #{tpu_custom_call.1} parent=1 // pred_check
      %p146 = pneg %p145
    $region67: #{tpu_custom_call.1} parent=1 // pred_check_branch
      %148 = sbr.rel (%p146) target = $region69
    $region68: #{tpu_custom_call.1} parent=1 // pred_region
      %149 = vst [vmem:[#allocation2] sm:$0xff] 0.0
      %s150 = sld [smem:[#allocation5]]
      %s151 = scalar_lea.vmem %s3, %s150
      // Predicated region
      $region70: #{tpu_custom_call.1} parent=68 // pred_check
        _
      $region71: #{tpu_custom_call.1} parent=68 // pred_check_branch
        %153 = sbr.rel target = $region73
      $region72: #{tpu_custom_call.1} parent=68 // pred_region
        // Predicated region
        $region85: #{tpu_custom_call.1} parent=72 // pred_check
          _
        $region86: #{tpu_custom_call.1} parent=72 // pred_check_branch
          %169 = sbr.rel (0) target = $region88
        $region87: #{tpu_custom_call.1} parent=72 // pred_region
          %s171 = ssub.s32 2, 1
          loop: start=0, step=1, limit=1
          $region89: #{tpu_custom_call.1} parent=87 // loop_pre_header
            _
          $region90: #{tpu_custom_call.1} parent=87 // loop_header
            %s173 = sphi 0, %s177
            %p174 = scmp.ge.s32.totalorder %s173, 1
            %s178 = sphi %s151, %s151
            %s179 = sphi [#allocation2], [#allocation2]
          $region91: #{tpu_custom_call.1} parent=87 // loop_header_branch
            %176 = sbr.rel (%p174) target = $region95
          $region92: #{tpu_custom_call.1} parent=87 // loop_body
            %v180 = vld [vmem:[%s178] sm:%s171]
            %181 = vst [vmem:[%s179] sm:%s171] %v180
          $region93: #{tpu_custom_call.1} parent=87 // loop_footer
            %s177 = sadd.s32 1, %s173
          $region94: #{tpu_custom_call.1} parent=87 // loop_footer_branch
            %172 = sbr.rel target = $region90
          $region95: #{tpu_custom_call.1} parent=87 // loop_exit
            _
        $region88: #{tpu_custom_call.1} parent=72 // pred_fallthru
          _
      $region73: #{tpu_custom_call.1} parent=68 // pred_fallthru
        _
      // Predicated region
      $region74: #{tpu_custom_call.1} parent=68 // pred_check
        _
      $region75: #{tpu_custom_call.1} parent=68 // pred_check_branch
        %155 = sbr.rel (0) target = $region77
      $region76: #{tpu_custom_call.1} parent=68 // pred_region
        %s157 = ssub.s32 2, 1
        loop: start=0, step=1, limit=1
        $region78: #{tpu_custom_call.1} parent=76 // loop_pre_header
          _
        $region79: #{tpu_custom_call.1} parent=76 // loop_header
          %s159 = sphi 0, %s163
          %p160 = scmp.ge.s32.totalorder %s159, 1
          %s164 = sphi %s151, %s151
          %s165 = sphi [#allocation2], [#allocation2]
        $region80: #{tpu_custom_call.1} parent=76 // loop_header_branch
          %162 = sbr.rel (%p160) target = $region84
        $region81: #{tpu_custom_call.1} parent=76 // loop_body
          %v166 = vld [vmem:[%s164] sm:%s157]
          %167 = vst [vmem:[%s165] sm:%s157] %v166
        $region82: #{tpu_custom_call.1} parent=76 // loop_footer
          %s163 = sadd.s32 1, %s159
        $region83: #{tpu_custom_call.1} parent=76 // loop_footer_branch
          %158 = sbr.rel target = $region79
        $region84: #{tpu_custom_call.1} parent=76 // loop_exit
          _
      $region77: #{tpu_custom_call.1} parent=68 // pred_fallthru
        _
      // Predicated region
      $region96: #{tpu_custom_call.1} parent=68 // pred_check
        _
      $region97: #{tpu_custom_call.1} parent=68 // pred_check_branch
        %184 = sbr.rel (0) target = $region99
      $region98: #{tpu_custom_call.1} parent=68 // pred_region
        %185 = vsyncadd [#allocation4], 16
      $region99: #{tpu_custom_call.1} parent=68 // pred_fallthru
        _
      %s186 = sld [smem:[#allocation5 + $0x1]]
      %s187 = scalar_lea.vmem %s3, %s186
      %s188 = scalar_lea.vmem [#allocation2], 1
      %s189 = scalar_lea.sflag [#allocation4], 1
      // Predicated region
      $region100: #{tpu_custom_call.1} parent=68 // pred_check
        _
      $region101: #{tpu_custom_call.1} parent=68 // pred_check_branch
        %191 = sbr.rel target = $region103
      $region102: #{tpu_custom_call.1} parent=68 // pred_region
        // Predicated region
        $region115: #{tpu_custom_call.1} parent=102 // pred_check
          _
        $region116: #{tpu_custom_call.1} parent=102 // pred_check_branch
          %207 = sbr.rel (0) target = $region118
        $region117: #{tpu_custom_call.1} parent=102 // pred_region
          %s209 = ssub.s32 2, 1
          loop: start=0, step=1, limit=1
          $region119: #{tpu_custom_call.1} parent=117 // loop_pre_header
            _
          $region120: #{tpu_custom_call.1} parent=117 // loop_header
            %s211 = sphi 0, %s215
            %p212 = scmp.ge.s32.totalorder %s211, 1
            %s216 = sphi %s187, %s187
            %s217 = sphi %s188, %s188
          $region121: #{tpu_custom_call.1} parent=117 // loop_header_branch
            %214 = sbr.rel (%p212) target = $region125
          $region122: #{tpu_custom_call.1} parent=117 // loop_body
            %v218 = vld [vmem:[%s216] sm:%s209]
            %219 = vst [vmem:[%s217] sm:%s209] %v218
          $region123: #{tpu_custom_call.1} parent=117 // loop_footer
            %s215 = sadd.s32 1, %s211
          $region124: #{tpu_custom_call.1} parent=117 // loop_footer_branch
            %210 = sbr.rel target = $region120
          $region125: #{tpu_custom_call.1} parent=117 // loop_exit
            _
        $region118: #{tpu_custom_call.1} parent=102 // pred_fallthru
          _
      $region103: #{tpu_custom_call.1} parent=68 // pred_fallthru
        _
      // Predicated region
      $region104: #{tpu_custom_call.1} parent=68 // pred_check
        _
      $region105: #{tpu_custom_call.1} parent=68 // pred_check_branch
        %193 = sbr.rel (0) target = $region107
      $region106: #{tpu_custom_call.1} parent=68 // pred_region
        %s195 = ssub.s32 2, 1
        loop: start=0, step=1, limit=1
        $region108: #{tpu_custom_call.1} parent=106 // loop_pre_header
          _
        $region109: #{tpu_custom_call.1} parent=106 // loop_header
          %s197 = sphi 0, %s201
          %p198 = scmp.ge.s32.totalorder %s197, 1
          %s202 = sphi %s187, %s187
          %s203 = sphi %s188, %s188
        $region110: #{tpu_custom_call.1} parent=106 // loop_header_branch
          %200 = sbr.rel (%p198) target = $region114
        $region111: #{tpu_custom_call.1} parent=106 // loop_body
          %v204 = vld [vmem:[%s202] sm:%s195]
          %205 = vst [vmem:[%s203] sm:%s195] %v204
        $region112: #{tpu_custom_call.1} parent=106 // loop_footer
          %s201 = sadd.s32 1, %s197
        $region113: #{tpu_custom_call.1} parent=106 // loop_footer_branch
          %196 = sbr.rel target = $region109
        $region114: #{tpu_custom_call.1} parent=106 // loop_exit
          _
      $region107: #{tpu_custom_call.1} parent=68 // pred_fallthru
        _
      // Predicated region
      $region126: #{tpu_custom_call.1} parent=68 // pred_check
        _
      $region127: #{tpu_custom_call.1} parent=68 // pred_check_branch
        %222 = sbr.rel (0) target = $region129
      $region128: #{tpu_custom_call.1} parent=68 // pred_region
        %223 = vsyncadd %s189, 16
      $region129: #{tpu_custom_call.1} parent=68 // pred_fallthru
        _
      %v224 = vld [vmem:[#allocation9] sm:$0xff]
      %v225 = vld [vmem:[#allocation15] sm:$0xff]
      %v226 = vld [vmem:[#allocation15 + $0x8] sm:$0xff]
      %v227 = vld [vmem:[#allocation15 + $0x10] sm:$0xff]
      %v228 = vld [vmem:[#allocation15 + $0x18] sm:$0xff]
      %v229 = vld [vmem:[#allocation15 + $0x20] sm:$0xff]
      %v230 = vld [vmem:[#allocation15 + $0x28] sm:$0xff]
      %v231 = vld [vmem:[#allocation15 + $0x30] sm:$0xff]
      %v232 = vld [vmem:[#allocation15 + $0x38] sm:$0xff]
      %v233 = vld [vmem:[#allocation15 + $0x40] sm:$0xff]
      %v234 = vld [vmem:[#allocation15 + $0x48] sm:$0xff]
      %v235 = vld [vmem:[#allocation15 + $0x50] sm:$0xff]
      %v236 = vld [vmem:[#allocation15 + $0x58] sm:$0xff]
      %v237 = vld [vmem:[#allocation15 + $0x60] sm:$0xff]
      %v238 = vld [vmem:[#allocation15 + $0x68] sm:$0xff]
      %v239 = vld [vmem:[#allocation15 + $0x70] sm:$0xff]
      %v240 = vld [vmem:[#allocation15 + $0x78] sm:$0xff]
      %v241 = vld [vmem:[#allocation15 + $0x80] sm:$0xff]
      %v242 = vld [vmem:[#allocation15 + $0x88] sm:$0xff]
      %v243 = vld [vmem:[#allocation15 + $0x90] sm:$0xff]
      %v244 = vld [vmem:[#allocation15 + $0x98] sm:$0xff]
      %v245 = vld [vmem:[#allocation15 + $0xa0] sm:$0xff]
      %v246 = vld [vmem:[#allocation15 + $0xa8] sm:$0xff]
      %v247 = vld [vmem:[#allocation15 + $0xb0] sm:$0xff]
      %v248 = vld [vmem:[#allocation15 + $0xb8] sm:$0xff]
      %v249 = vld [vmem:[#allocation15 + $0xc0] sm:$0xff]
      %v250 = vld [vmem:[#allocation15 + $0xc8] sm:$0xff]
      %v251 = vld [vmem:[#allocation15 + $0xd0] sm:$0xff]
      %v252 = vld [vmem:[#allocation15 + $0xd8] sm:$0xff]
      %v253 = vld [vmem:[#allocation15 + $0xe0] sm:$0xff]
      %v254 = vld [vmem:[#allocation15 + $0xe8] sm:$0xff]
      %v255 = vld [vmem:[#allocation15 + $0xf0] sm:$0xff]
      %v256 = vld [vmem:[#allocation15 + $0xf8] sm:$0xff]
      %v257 = vld [vmem:[#allocation15 + $0x100] sm:$0xff]
      %v258 = vld [vmem:[#allocation15 + $0x108] sm:$0xff]
      %v259 = vld [vmem:[#allocation15 + $0x110] sm:$0xff]
      %v260 = vld [vmem:[#allocation15 + $0x118] sm:$0xff]
      %v261 = vld [vmem:[#allocation15 + $0x120] sm:$0xff]
      %v262 = vld [vmem:[#allocation15 + $0x128] sm:$0xff]
      %v263 = vld [vmem:[#allocation15 + $0x130] sm:$0xff]
      %v264 = vld [vmem:[#allocation15 + $0x138] sm:$0xff]
      %v265 = vld [vmem:[#allocation15 + $0x140] sm:$0xff]
      %v266 = vld [vmem:[#allocation15 + $0x148] sm:$0xff]
      %v267 = vld [vmem:[#allocation15 + $0x150] sm:$0xff]
      %v268 = vld [vmem:[#allocation15 + $0x158] sm:$0xff]
      %v269 = vld [vmem:[#allocation15 + $0x160] sm:$0xff]
      %v270 = vld [vmem:[#allocation15 + $0x168] sm:$0xff]
      %v271 = vld [vmem:[#allocation15 + $0x170] sm:$0xff]
      %v272 = vld [vmem:[#allocation15 + $0x178] sm:$0xff]
      %v273 = vld [vmem:[#allocation15 + $0x180] sm:$0xff]
      %v274 = vld [vmem:[#allocation15 + $0x188] sm:$0xff]
      %v275 = vld [vmem:[#allocation15 + $0x190] sm:$0xff]
      %v276 = vld [vmem:[#allocation15 + $0x198] sm:$0xff]
      %v277 = vld [vmem:[#allocation15 + $0x1a0] sm:$0xff]
      %v278 = vld [vmem:[#allocation15 + $0x1a8] sm:$0xff]
      %v279 = vld [vmem:[#allocation15 + $0x1b0] sm:$0xff]
      %v280 = vld [vmem:[#allocation15 + $0x1b8] sm:$0xff]
      %v281 = vld [vmem:[#allocation15 + $0x1c0] sm:$0xff]
      %v282 = vld [vmem:[#allocation15 + $0x1c8] sm:$0xff]
      %v283 = vld [vmem:[#allocation15 + $0x1d0] sm:$0xff]
      %v284 = vld [vmem:[#allocation15 + $0x1d8] sm:$0xff]
      %v285 = vld [vmem:[#allocation15 + $0x1e0] sm:$0xff]
      %v286 = vld [vmem:[#allocation15 + $0x1e8] sm:$0xff]
      %v287 = vld [vmem:[#allocation15 + $0x1f0] sm:$0xff]
      %v288 = vld [vmem:[#allocation15 + $0x1f8] sm:$0xff]
      %v289 = vld [vmem:[%s7] sm:$0xf]
      %v291 = vperm.slane %v289, 0
      %v292 = vperm.slane %v289, 1
      %v293 = vperm.slane %v289, 2
      %v294 = vperm.slane %v289, 3
      %299 = vmatpush.msra.mxu0 %v285
      %300 = vmatpush.msra.mxu0 %v281
      %301 = vmatpush.msra.mxu0 %v277
      %302 = vmatpush.msra.mxu0 %v273
      %303 = vmatpush.msra.mxu0 %v269
      %304 = vmatpush.msra.mxu0 %v265
      %305 = vmatpush.msra.mxu0 %v261
      %306 = vmatpush.msra.mxu0 %v257
      %307 = vmatpush.msra.mxu0 %v253
      %308 = vmatpush.msra.mxu0 %v249
      %309 = vmatpush.msra.mxu0 %v245
      %310 = vmatpush.msra.mxu0 %v241
      %311 = vmatpush.msra.mxu0 %v237
      %312 = vmatpush.msra.mxu0 %v233
      %313 = vmatpush.msra.mxu0 %v229
      %314 = vmatpush.msra.mxu0 %v225
      %315 = vmatmul.f32.gmra.mxu0 %v224
      %v316 = vpop.f32.mrf.mxu0
      %v317 = vadd.f32 %v291, %v316
      %318 = vdwg.mxu0
      %319 = vmatpush.msra.mxu0 %v286
      %320 = vmatpush.msra.mxu0 %v282
      %321 = vmatpush.msra.mxu0 %v278
      %322 = vmatpush.msra.mxu0 %v274
      %323 = vmatpush.msra.mxu0 %v270
      %324 = vmatpush.msra.mxu0 %v266
      %325 = vmatpush.msra.mxu0 %v262
      %326 = vmatpush.msra.mxu0 %v258
      %327 = vmatpush.msra.mxu0 %v254
      %328 = vmatpush.msra.mxu0 %v250
      %329 = vmatpush.msra.mxu0 %v246
      %330 = vmatpush.msra.mxu0 %v242
      %331 = vmatpush.msra.mxu0 %v238
      %332 = vmatpush.msra.mxu0 %v234
      %333 = vmatpush.msra.mxu0 %v230
      %334 = vmatpush.msra.mxu0 %v226
      %335 = vmatmul.f32.gmra.mxu0 %v224
      %v336 = vpop.f32.mrf.mxu0
      %v337 = vadd.f32 %v292, %v336
      %338 = vdwg.mxu0
      %339 = vmatpush.msra.mxu0 %v287
      %340 = vmatpush.msra.mxu0 %v283
      %341 = vmatpush.msra.mxu0 %v279
      %342 = vmatpush.msra.mxu0 %v275
      %343 = vmatpush.msra.mxu0 %v271
      %344 = vmatpush.msra.mxu0 %v267
      %345 = vmatpush.msra.mxu0 %v263
      %346 = vmatpush.msra.mxu0 %v259
      %347 = vmatpush.msra.mxu0 %v255
      %348 = vmatpush.msra.mxu0 %v251
      %349 = vmatpush.msra.mxu0 %v247
      %350 = vmatpush.msra.mxu0 %v243
      %351 = vmatpush.msra.mxu0 %v239
      %352 = vmatpush.msra.mxu0 %v235
      %353 = vmatpush.msra.mxu0 %v231
      %354 = vmatpush.msra.mxu0 %v227
      %355 = vmatmul.f32.gmra.mxu0 %v224
      %v356 = vpop.f32.mrf.mxu0
      %v357 = vadd.f32 %v293, %v356
      %358 = vdwg.mxu0
      %359 = vmatpush.msra.mxu0 %v288
      %360 = vmatpush.msra.mxu0 %v284
      %361 = vmatpush.msra.mxu0 %v280
      %362 = vmatpush.msra.mxu0 %v276
      %363 = vmatpush.msra.mxu0 %v272
      %364 = vmatpush.msra.mxu0 %v268
      %365 = vmatpush.msra.mxu0 %v264
      %366 = vmatpush.msra.mxu0 %v260
      %367 = vmatpush.msra.mxu0 %v256
      %368 = vmatpush.msra.mxu0 %v252
      %369 = vmatpush.msra.mxu0 %v248
      %370 = vmatpush.msra.mxu0 %v244
      %371 = vmatpush.msra.mxu0 %v240
      %372 = vmatpush.msra.mxu0 %v236
      %373 = vmatpush.msra.mxu0 %v232
      %374 = vmatpush.msra.mxu0 %v228
      %375 = vmatmul.f32.gmra.mxu0 %v224
      %v376 = vpop.f32.mrf.mxu0
      %v377 = vadd.f32 %v294, %v376
      %378 = vdwg.mxu0
      %s379 = smul.u32 1, 1
      %s380 = sshll.u32 %s379, 4
      %381 = dma.done [#allocation4], %s380
      %s382 = sshll.u32 %s379, 4
      %383 = dma.done %s189, %s382
      %v384 = vld [vmem:[#allocation2] sm:$0xff]
      %v385 = vld [vmem:[#allocation12] sm:$0xff]
      %v386 = vld [vmem:[#allocation12 + $0x8] sm:$0xff]
      %v387 = vld [vmem:[#allocation12 + $0x10] sm:$0xff]
      %v388 = vld [vmem:[#allocation12 + $0x18] sm:$0xff]
      %v389 = vld [vmem:[#allocation12 + $0x20] sm:$0xff]
      %v390 = vld [vmem:[#allocation12 + $0x28] sm:$0xff]
      %v391 = vld [vmem:[#allocation12 + $0x30] sm:$0xff]
      %v392 = vld [vmem:[#allocation12 + $0x38] sm:$0xff]
      %v393 = vld [vmem:[#allocation12 + $0x40] sm:$0xff]
      %v394 = vld [vmem:[#allocation12 + $0x48] sm:$0xff]
      %v395 = vld [vmem:[#allocation12 + $0x50] sm:$0xff]
      %v396 = vld [vmem:[#allocation12 + $0x58] sm:$0xff]
      %v397 = vld [vmem:[#allocation12 + $0x60] sm:$0xff]
      %v398 = vld [vmem:[#allocation12 + $0x68] sm:$0xff]
      %v399 = vld [vmem:[#allocation12 + $0x70] sm:$0xff]
      %v400 = vld [vmem:[#allocation12 + $0x78] sm:$0xff]
      %v401 = vld [vmem:[#allocation12 + $0x80] sm:$0xff]
      %v402 = vld [vmem:[#allocation12 + $0x88] sm:$0xff]
      %v403 = vld [vmem:[#allocation12 + $0x90] sm:$0xff]
      %v404 = vld [vmem:[#allocation12 + $0x98] sm:$0xff]
      %v405 = vld [vmem:[#allocation12 + $0xa0] sm:$0xff]
      %v406 = vld [vmem:[#allocation12 + $0xa8] sm:$0xff]
      %v407 = vld [vmem:[#allocation12 + $0xb0] sm:$0xff]
      %v408 = vld [vmem:[#allocation12 + $0xb8] sm:$0xff]
      %v409 = vld [vmem:[#allocation12 + $0xc0] sm:$0xff]
      %v410 = vld [vmem:[#allocation12 + $0xc8] sm:$0xff]
      %v411 = vld [vmem:[#allocation12 + $0xd0] sm:$0xff]
      %v412 = vld [vmem:[#allocation12 + $0xd8] sm:$0xff]
      %v413 = vld [vmem:[#allocation12 + $0xe0] sm:$0xff]
      %v414 = vld [vmem:[#allocation12 + $0xe8] sm:$0xff]
      %v415 = vld [vmem:[#allocation12 + $0xf0] sm:$0xff]
      %v416 = vld [vmem:[#allocation12 + $0xf8] sm:$0xff]
      %v417 = vld [vmem:[#allocation12 + $0x100] sm:$0xff]
      %v418 = vld [vmem:[#allocation12 + $0x108] sm:$0xff]
      %v419 = vld [vmem:[#allocation12 + $0x110] sm:$0xff]
      %v420 = vld [vmem:[#allocation12 + $0x118] sm:$0xff]
      %v421 = vld [vmem:[#allocation12 + $0x120] sm:$0xff]
      %v422 = vld [vmem:[#allocation12 + $0x128] sm:$0xff]
      %v423 = vld [vmem:[#allocation12 + $0x130] sm:$0xff]
      %v424 = vld [vmem:[#allocation12 + $0x138] sm:$0xff]
      %v425 = vld [vmem:[#allocation12 + $0x140] sm:$0xff]
      %v426 = vld [vmem:[#allocation12 + $0x148] sm:$0xff]
      %v427 = vld [vmem:[#allocation12 + $0x150] sm:$0xff]
      %v428 = vld [vmem:[#allocation12 + $0x158] sm:$0xff]
      %v429 = vld [vmem:[#allocation12 + $0x160] sm:$0xff]
      %v430 = vld [vmem:[#allocation12 + $0x168] sm:$0xff]
      %v431 = vld [vmem:[#allocation12 + $0x170] sm:$0xff]
      %v432 = vld [vmem:[#allocation12 + $0x178] sm:$0xff]
      %v433 = vld [vmem:[#allocation12 + $0x180] sm:$0xff]
      %v434 = vld [vmem:[#allocation12 + $0x188] sm:$0xff]
      %v435 = vld [vmem:[#allocation12 + $0x190] sm:$0xff]
      %v436 = vld [vmem:[#allocation12 + $0x198] sm:$0xff]
      %v437 = vld [vmem:[#allocation12 + $0x1a0] sm:$0xff]
      %v438 = vld [vmem:[#allocation12 + $0x1a8] sm:$0xff]
      %v439 = vld [vmem:[#allocation12 + $0x1b0] sm:$0xff]
      %v440 = vld [vmem:[#allocation12 + $0x1b8] sm:$0xff]
      %v441 = vld [vmem:[#allocation12 + $0x1c0] sm:$0xff]
      %v442 = vld [vmem:[#allocation12 + $0x1c8] sm:$0xff]
      %v443 = vld [vmem:[#allocation12 + $0x1d0] sm:$0xff]
      %v444 = vld [vmem:[#allocation12 + $0x1d8] sm:$0xff]
      %v445 = vld [vmem:[#allocation12 + $0x1e0] sm:$0xff]
      %v446 = vld [vmem:[#allocation12 + $0x1e8] sm:$0xff]
      %v447 = vld [vmem:[#allocation12 + $0x1f0] sm:$0xff]
      %v448 = vld [vmem:[#allocation12 + $0x1f8] sm:$0xff]
      %449 = vmatpush.msra.mxu0 %v445
      %450 = vmatpush.msra.mxu0 %v441
      %451 = vmatpush.msra.mxu0 %v437
      %452 = vmatpush.msra.mxu0 %v433
      %453 = vmatpush.msra.mxu0 %v429
      %454 = vmatpush.msra.mxu0 %v425
      %455 = vmatpush.msra.mxu0 %v421
      %456 = vmatpush.msra.mxu0 %v417
      %457 = vmatpush.msra.mxu0 %v413
      %458 = vmatpush.msra.mxu0 %v409
      %459 = vmatpush.msra.mxu0 %v405
      %460 = vmatpush.msra.mxu0 %v401
      %461 = vmatpush.msra.mxu0 %v397
      %462 = vmatpush.msra.mxu0 %v393
      %463 = vmatpush.msra.mxu0 %v389
      %464 = vmatpush.msra.mxu0 %v385
      %465 = vmatmul.f32.gmra.mxu0 %v384
      %v466 = vpop.f32.mrf.mxu0
      %v467 = vadd.f32 %v317, %v466
      %468 = vdwg.mxu0
      %469 = vmatpush.msra.mxu0 %v446
      %470 = vmatpush.msra.mxu0 %v442
      %471 = vmatpush.msra.mxu0 %v438
      %472 = vmatpush.msra.mxu0 %v434
      %473 = vmatpush.msra.mxu0 %v430
      %474 = vmatpush.msra.mxu0 %v426
      %475 = vmatpush.msra.mxu0 %v422
      %476 = vmatpush.msra.mxu0 %v418
      %477 = vmatpush.msra.mxu0 %v414
      %478 = vmatpush.msra.mxu0 %v410
      %479 = vmatpush.msra.mxu0 %v406
      %480 = vmatpush.msra.mxu0 %v402
      %481 = vmatpush.msra.mxu0 %v398
      %482 = vmatpush.msra.mxu0 %v394
      %483 = vmatpush.msra.mxu0 %v390
      %484 = vmatpush.msra.mxu0 %v386
      %485 = vmatmul.f32.gmra.mxu0 %v384
      %v486 = vpop.f32.mrf.mxu0
      %v487 = vadd.f32 %v337, %v486
      %488 = vdwg.mxu0
      %489 = vmatpush.msra.mxu0 %v447
      %490 = vmatpush.msra.mxu0 %v443
      %491 = vmatpush.msra.mxu0 %v439
      %492 = vmatpush.msra.mxu0 %v435
      %493 = vmatpush.msra.mxu0 %v431
      %494 = vmatpush.msra.mxu0 %v427
      %495 = vmatpush.msra.mxu0 %v423
      %496 = vmatpush.msra.mxu0 %v419
      %497 = vmatpush.msra.mxu0 %v415
      %498 = vmatpush.msra.mxu0 %v411
      %499 = vmatpush.msra.mxu0 %v407
      %500 = vmatpush.msra.mxu0 %v403
      %501 = vmatpush.msra.mxu0 %v399
      %502 = vmatpush.msra.mxu0 %v395
      %503 = vmatpush.msra.mxu0 %v391
      %504 = vmatpush.msra.mxu0 %v387
      %505 = vmatmul.f32.gmra.mxu0 %v384
      %v506 = vpop.f32.mrf.mxu0
      %v507 = vadd.f32 %v357, %v506
      %508 = vdwg.mxu0
      %509 = vmatpush.msra.mxu0 %v448
      %510 = vmatpush.msra.mxu0 %v444
      %511 = vmatpush.msra.mxu0 %v440
      %512 = vmatpush.msra.mxu0 %v436
      %513 = vmatpush.msra.mxu0 %v432
      %514 = vmatpush.msra.mxu0 %v428
      %515 = vmatpush.msra.mxu0 %v424
      %516 = vmatpush.msra.mxu0 %v420
      %517 = vmatpush.msra.mxu0 %v416
      %518 = vmatpush.msra.mxu0 %v412
      %519 = vmatpush.msra.mxu0 %v408
      %520 = vmatpush.msra.mxu0 %v404
      %521 = vmatpush.msra.mxu0 %v400
      %522 = vmatpush.msra.mxu0 %v396
      %523 = vmatpush.msra.mxu0 %v392
      %524 = vmatpush.msra.mxu0 %v388
      %525 = vmatmul.f32.gmra.mxu0 %v384
      %v526 = vpop.f32.mrf.mxu0
      %v527 = vadd.f32 %v377, %v526
      %528 = vdwg.mxu0
      %v529 = vxor.u32 %v467, 2147483648
      %v530 = vxor.u32 %v487, 2147483648
      %v531 = vxor.u32 %v507, 2147483648
      %v532 = vmul.f32 %v529, 1.442695
      %v533 = vpow.pop %v532
      %v534 = vmul.f32 %v530, 1.442695
      %v535 = vpow.pop %v534
      %v536 = vmul.f32 %v531, 1.442695
      %v537 = vpow.pop %v536
      %v538 = vadd.f32 %v533, 1.0
      %v539 = vadd.f32 %v535, 1.0
      %v540 = vadd.f32 %v537, 1.0
      %v541 = vrcp.pop %v538
      %v542 = vmul.f32 %v538, %v541
      %v543 = vsub.f32 1.0, %v542
      %v544 = vmul.f32 %v541, %v543
      %v545 = vadd.f32 %v541, %v544
      %vm546 = vweird.f32 %v538
      %vm547 = vweird.f32 %v541
      %vm548 = vmor %vm546, %vm547
      %v549 = vsel %vm548, %v541, %v545
      %v550 = vand.u32 2147483647, %v538
      %vm551 = vcmp.eq.f32.partialorder %v550, 8.507059e+37
      %v552 = vand.u32 %v538, 2147483648
      %v553 = vor.u32 1.1754944e-38, %v552
      %v554 = vsel %vm551, %v553, %v549
      %v555 = vmul.f32 1.0, %v554
      %v556 = vrcp.pop %v539
      %v557 = vmul.f32 %v539, %v556
      %v558 = vsub.f32 1.0, %v557
      %v559 = vmul.f32 %v556, %v558
      %v560 = vadd.f32 %v556, %v559
      %vm561 = vweird.f32 %v539
      %vm562 = vweird.f32 %v556
      %vm563 = vmor %vm561, %vm562
      %v564 = vsel %vm563, %v556, %v560
      %v565 = vand.u32 2147483647, %v539
      %vm566 = vcmp.eq.f32.partialorder %v565, 8.507059e+37
      %v567 = vand.u32 %v539, 2147483648
      %v568 = vor.u32 1.1754944e-38, %v567
      %v569 = vsel %vm566, %v568, %v564
      %v570 = vmul.f32 1.0, %v569
      %v571 = vrcp.pop %v540
      %v572 = vmul.f32 %v540, %v571
      %v573 = vsub.f32 1.0, %v572
      %v574 = vmul.f32 %v571, %v573
      %v575 = vadd.f32 %v571, %v574
      %vm576 = vweird.f32 %v540
      %vm577 = vweird.f32 %v571
      %vm578 = vmor %vm576, %vm577
      %v579 = vsel %vm578, %v571, %v575
      %v580 = vand.u32 2147483647, %v540
      %vm581 = vcmp.eq.f32.partialorder %v580, 8.507059e+37
      %v582 = vand.u32 %v540, 2147483648
      %v583 = vor.u32 1.1754944e-38, %v582
      %v584 = vsel %vm581, %v583, %v579
      %v585 = vmul.f32 1.0, %v584
      %v586 = vtanh.pop %v527
      %v587 = vld [vmem:[#allocation10] sm:$0xff]
      %v588 = vmul.f32 %v570, %v587
      %v589 = vmul.f32 %v555, %v586
      %v590 = vadd.f32 %v588, %v589
      %v591 = vtanh.pop %v590
      %v592 = vmul.f32 %v585, %v591
      %593 = vst [vmem:[#allocation19] sm:$0xff] %v592
      %594 = vst [vmem:[#allocation21] sm:$0xff] %v590
      %s595 = scalar_lea.vmem [#allocation9], 8
      %v596 = vld [vmem:[%s595] sm:$0xff]
      %s597 = scalar_lea.vmem [#allocation15], 512
      %v598 = vld [vmem:[%s597] sm:$0xff]
      %v599 = vld [vmem:[%s597 + $0x8] sm:$0xff]
      %v600 = vld [vmem:[%s597 + $0x10] sm:$0xff]
      %v601 = vld [vmem:[%s597 + $0x18] sm:$0xff]
      %v602 = vld [vmem:[%s597 + $0x20] sm:$0xff]
      %v603 = vld [vmem:[%s597 + $0x28] sm:$0xff]
      %v604 = vld [vmem:[%s597 + $0x30] sm:$0xff]
      %v605 = vld [vmem:[%s597 + $0x38] sm:$0xff]
      %v606 = vld [vmem:[%s597 + $0x40] sm:$0xff]
      %v607 = vld [vmem:[%s597 + $0x48] sm:$0xff]
      %v608 = vld [vmem:[%s597 + $0x50] sm:$0xff]
      %v609 = vld [vmem:[%s597 + $0x58] sm:$0xff]
      %v610 = vld [vmem:[%s597 + $0x60] sm:$0xff]
      %v611 = vld [vmem:[%s597 + $0x68] sm:$0xff]
      %v612 = vld [vmem:[%s597 + $0x70] sm:$0xff]
      %v613 = vld [vmem:[%s597 + $0x78] sm:$0xff]
      %v614 = vld [vmem:[%s597 + $0x80] sm:$0xff]
      %v615 = vld [vmem:[%s597 + $0x88] sm:$0xff]
      %v616 = vld [vmem:[%s597 + $0x90] sm:$0xff]
      %v617 = vld [vmem:[%s597 + $0x98] sm:$0xff]
      %v618 = vld [vmem:[%s597 + $0xa0] sm:$0xff]
      %v619 = vld [vmem:[%s597 + $0xa8] sm:$0xff]
      %v620 = vld [vmem:[%s597 + $0xb0] sm:$0xff]
      %v621 = vld [vmem:[%s597 + $0xb8] sm:$0xff]
      %v622 = vld [vmem:[%s597 + $0xc0] sm:$0xff]
      %v623 = vld [vmem:[%s597 + $0xc8] sm:$0xff]
      %v624 = vld [vmem:[%s597 + $0xd0] sm:$0xff]
      %v625 = vld [vmem:[%s597 + $0xd8] sm:$0xff]
      %v626 = vld [vmem:[%s597 + $0xe0] sm:$0xff]
      %v627 = vld [vmem:[%s597 + $0xe8] sm:$0xff]
      %v628 = vld [vmem:[%s597 + $0xf0] sm:$0xff]
      %v629 = vld [vmem:[%s597 + $0xf8] sm:$0xff]
      %v630 = vld [vmem:[%s597 + $0x100] sm:$0xff]
      %v631 = vld [vmem:[%s597 + $0x108] sm:$0xff]
      %v632 = vld [vmem:[%s597 + $0x110] sm:$0xff]
      %v633 = vld [vmem:[%s597 + $0x118] sm:$0xff]
      %v634 = vld [vmem:[%s597 + $0x120] sm:$0xff]
      %v635 = vld [vmem:[%s597 + $0x128] sm:$0xff]
      %v636 = vld [vmem:[%s597 + $0x130] sm:$0xff]
      %v637 = vld [vmem:[%s597 + $0x138] sm:$0xff]
      %v638 = vld [vmem:[%s597 + $0x140] sm:$0xff]
      %v639 = vld [vmem:[%s597 + $0x148] sm:$0xff]
      %v640 = vld [vmem:[%s597 + $0x150] sm:$0xff]
      %v641 = vld [vmem:[%s597 + $0x158] sm:$0xff]
      %v642 = vld [vmem:[%s597 + $0x160] sm:$0xff]
      %v643 = vld [vmem:[%s597 + $0x168] sm:$0xff]
      %v644 = vld [vmem:[%s597 + $0x170] sm:$0xff]
      %v645 = vld [vmem:[%s597 + $0x178] sm:$0xff]
      %v646 = vld [vmem:[%s597 + $0x180] sm:$0xff]
      %v647 = vld [vmem:[%s597 + $0x188] sm:$0xff]
      %v648 = vld [vmem:[%s597 + $0x190] sm:$0xff]
      %v649 = vld [vmem:[%s597 + $0x198] sm:$0xff]
      %v650 = vld [vmem:[%s597 + $0x1a0] sm:$0xff]
      %v651 = vld [vmem:[%s597 + $0x1a8] sm:$0xff]
      %v652 = vld [vmem:[%s597 + $0x1b0] sm:$0xff]
      %v653 = vld [vmem:[%s597 + $0x1b8] sm:$0xff]
      %v654 = vld [vmem:[%s597 + $0x1c0] sm:$0xff]
      %v655 = vld [vmem:[%s597 + $0x1c8] sm:$0xff]
      %v656 = vld [vmem:[%s597 + $0x1d0] sm:$0xff]
      %v657 = vld [vmem:[%s597 + $0x1d8] sm:$0xff]
      %v658 = vld [vmem:[%s597 + $0x1e0] sm:$0xff]
      %v659 = vld [vmem:[%s597 + $0x1e8] sm:$0xff]
      %v660 = vld [vmem:[%s597 + $0x1f0] sm:$0xff]
      %v661 = vld [vmem:[%s597 + $0x1f8] sm:$0xff]
      %s662 = scalar_lea.vmem %s7, 4
      %v663 = vld [vmem:[%s662] sm:$0xf]
      %v665 = vperm.slane %v663, 0
      %v666 = vperm.slane %v663, 1
      %v667 = vperm.slane %v663, 2
      %v668 = vperm.slane %v663, 3
      %673 = vmatpush.msra.mxu0 %v658
      %674 = vmatpush.msra.mxu0 %v654
      %675 = vmatpush.msra.mxu0 %v650
      %676 = vmatpush.msra.mxu0 %v646
      %677 = vmatpush.msra.mxu0 %v642
      %678 = vmatpush.msra.mxu0 %v638
      %679 = vmatpush.msra.mxu0 %v634
      %680 = vmatpush.msra.mxu0 %v630
      %681 = vmatpush.msra.mxu0 %v626
      %682 = vmatpush.msra.mxu0 %v622
      %683 = vmatpush.msra.mxu0 %v618
      %684 = vmatpush.msra.mxu0 %v614
      %685 = vmatpush.msra.mxu0 %v610
      %686 = vmatpush.msra.mxu0 %v606
      %687 = vmatpush.msra.mxu0 %v602
      %688 = vmatpush.msra.mxu0 %v598
      %689 = vmatmul.f32.gmra.mxu0 %v596
      %v690 = vpop.f32.mrf.mxu0
      %v691 = vadd.f32 %v665, %v690
      %692 = vdwg.mxu0
      %693 = vmatpush.msra.mxu0 %v659
      %694 = vmatpush.msra.mxu0 %v655
      %695 = vmatpush.msra.mxu0 %v651
      %696 = vmatpush.msra.mxu0 %v647
      %697 = vmatpush.msra.mxu0 %v643
      %698 = vmatpush.msra.mxu0 %v639
      %699 = vmatpush.msra.mxu0 %v635
      %700 = vmatpush.msra.mxu0 %v631
      %701 = vmatpush.msra.mxu0 %v627
      %702 = vmatpush.msra.mxu0 %v623
      %703 = vmatpush.msra.mxu0 %v619
      %704 = vmatpush.msra.mxu0 %v615
      %705 = vmatpush.msra.mxu0 %v611
      %706 = vmatpush.msra.mxu0 %v607
      %707 = vmatpush.msra.mxu0 %v603
      %708 = vmatpush.msra.mxu0 %v599
      %709 = vmatmul.f32.gmra.mxu0 %v596
      %v710 = vpop.f32.mrf.mxu0
      %v711 = vadd.f32 %v666, %v710
      %712 = vdwg.mxu0
      %713 = vmatpush.msra.mxu0 %v660
      %714 = vmatpush.msra.mxu0 %v656
      %715 = vmatpush.msra.mxu0 %v652
      %716 = vmatpush.msra.mxu0 %v648
      %717 = vmatpush.msra.mxu0 %v644
      %718 = vmatpush.msra.mxu0 %v640
      %719 = vmatpush.msra.mxu0 %v636
      %720 = vmatpush.msra.mxu0 %v632
      %721 = vmatpush.msra.mxu0 %v628
      %722 = vmatpush.msra.mxu0 %v624
      %723 = vmatpush.msra.mxu0 %v620
      %724 = vmatpush.msra.mxu0 %v616
      %725 = vmatpush.msra.mxu0 %v612
      %726 = vmatpush.msra.mxu0 %v608
      %727 = vmatpush.msra.mxu0 %v604
      %728 = vmatpush.msra.mxu0 %v600
      %729 = vmatmul.f32.gmra.mxu0 %v596
      %v730 = vpop.f32.mrf.mxu0
      %v731 = vadd.f32 %v667, %v730
      %732 = vdwg.mxu0
      %733 = vmatpush.msra.mxu0 %v661
      %734 = vmatpush.msra.mxu0 %v657
      %735 = vmatpush.msra.mxu0 %v653
      %736 = vmatpush.msra.mxu0 %v649
      %737 = vmatpush.msra.mxu0 %v645
      %738 = vmatpush.msra.mxu0 %v641
      %739 = vmatpush.msra.mxu0 %v637
      %740 = vmatpush.msra.mxu0 %v633
      %741 = vmatpush.msra.mxu0 %v629
      %742 = vmatpush.msra.mxu0 %v625
      %743 = vmatpush.msra.mxu0 %v621
      %744 = vmatpush.msra.mxu0 %v617
      %745 = vmatpush.msra.mxu0 %v613
      %746 = vmatpush.msra.mxu0 %v609
      %747 = vmatpush.msra.mxu0 %v605
      %748 = vmatpush.msra.mxu0 %v601
      %749 = vmatmul.f32.gmra.mxu0 %v596
      %v750 = vpop.f32.mrf.mxu0
      %v751 = vadd.f32 %v668, %v750
      %752 = vdwg.mxu0
      %v753 = vld [vmem:[#allocation13] sm:$0xff]
      %v754 = vld [vmem:[#allocation13 + $0x8] sm:$0xff]
      %v755 = vld [vmem:[#allocation13 + $0x10] sm:$0xff]
      %v756 = vld [vmem:[#allocation13 + $0x18] sm:$0xff]
      %v757 = vld [vmem:[#allocation13 + $0x20] sm:$0xff]
      %v758 = vld [vmem:[#allocation13 + $0x28] sm:$0xff]
      %v759 = vld [vmem:[#allocation13 + $0x30] sm:$0xff]
      %v760 = vld [vmem:[#allocation13 + $0x38] sm:$0xff]
      %v761 = vld [vmem:[#allocation13 + $0x40] sm:$0xff]
      %v762 = vld [vmem:[#allocation13 + $0x48] sm:$0xff]
      %v763 = vld [vmem:[#allocation13 + $0x50] sm:$0xff]
      %v764 = vld [vmem:[#allocation13 + $0x58] sm:$0xff]
      %v765 = vld [vmem:[#allocation13 + $0x60] sm:$0xff]
      %v766 = vld [vmem:[#allocation13 + $0x68] sm:$0xff]
      %v767 = vld [vmem:[#allocation13 + $0x70] sm:$0xff]
      %v768 = vld [vmem:[#allocation13 + $0x78] sm:$0xff]
      %v769 = vld [vmem:[#allocation13 + $0x80] sm:$0xff]
      %v770 = vld [vmem:[#allocation13 + $0x88] sm:$0xff]
      %v771 = vld [vmem:[#allocation13 + $0x90] sm:$0xff]
      %v772 = vld [vmem:[#allocation13 + $0x98] sm:$0xff]
      %v773 = vld [vmem:[#allocation13 + $0xa0] sm:$0xff]
      %v774 = vld [vmem:[#allocation13 + $0xa8] sm:$0xff]
      %v775 = vld [vmem:[#allocation13 + $0xb0] sm:$0xff]
      %v776 = vld [vmem:[#allocation13 + $0xb8] sm:$0xff]
      %v777 = vld [vmem:[#allocation13 + $0xc0] sm:$0xff]
      %v778 = vld [vmem:[#allocation13 + $0xc8] sm:$0xff]
      %v779 = vld [vmem:[#allocation13 + $0xd0] sm:$0xff]
      %v780 = vld [vmem:[#allocation13 + $0xd8] sm:$0xff]
      %v781 = vld [vmem:[#allocation13 + $0xe0] sm:$0xff]
      %v782 = vld [vmem:[#allocation13 + $0xe8] sm:$0xff]
      %v783 = vld [vmem:[#allocation13 + $0xf0] sm:$0xff]
      %v784 = vld [vmem:[#allocation13 + $0xf8] sm:$0xff]
      %v785 = vld [vmem:[#allocation13 + $0x100] sm:$0xff]
      %v786 = vld [vmem:[#allocation13 + $0x108] sm:$0xff]
      %v787 = vld [vmem:[#allocation13 + $0x110] sm:$0xff]
      %v788 = vld [vmem:[#allocation13 + $0x118] sm:$0xff]
      %v789 = vld [vmem:[#allocation13 + $0x120] sm:$0xff]
      %v790 = vld [vmem:[#allocation13 + $0x128] sm:$0xff]
      %v791 = vld [vmem:[#allocation13 + $0x130] sm:$0xff]
      %v792 = vld [vmem:[#allocation13 + $0x138] sm:$0xff]
      %v793 = vld [vmem:[#allocation13 + $0x140] sm:$0xff]
      %v794 = vld [vmem:[#allocation13 + $0x148] sm:$0xff]
      %v795 = vld [vmem:[#allocation13 + $0x150] sm:$0xff]
      %v796 = vld [vmem:[#allocation13 + $0x158] sm:$0xff]
      %v797 = vld [vmem:[#allocation13 + $0x160] sm:$0xff]
      %v798 = vld [vmem:[#allocation13 + $0x168] sm:$0xff]
      %v799 = vld [vmem:[#allocation13 + $0x170] sm:$0xff]
      %v800 = vld [vmem:[#allocation13 + $0x178] sm:$0xff]
      %v801 = vld [vmem:[#allocation13 + $0x180] sm:$0xff]
      %v802 = vld [vmem:[#allocation13 + $0x188] sm:$0xff]
      %v803 = vld [vmem:[#allocation13 + $0x190] sm:$0xff]
      %v804 = vld [vmem:[#allocation13 + $0x198] sm:$0xff]
      %v805 = vld [vmem:[#allocation13 + $0x1a0] sm:$0xff]
      %v806 = vld [vmem:[#allocation13 + $0x1a8] sm:$0xff]
      %v807 = vld [vmem:[#allocation13 + $0x1b0] sm:$0xff]
      %v808 = vld [vmem:[#allocation13 + $0x1b8] sm:$0xff]
      %v809 = vld [vmem:[#allocation13 + $0x1c0] sm:$0xff]
      %v810 = vld [vmem:[#allocation13 + $0x1c8] sm:$0xff]
      %v811 = vld [vmem:[#allocation13 + $0x1d0] sm:$0xff]
      %v812 = vld [vmem:[#allocation13 + $0x1d8] sm:$0xff]
      %v813 = vld [vmem:[#allocation13 + $0x1e0] sm:$0xff]
      %v814 = vld [vmem:[#allocation13 + $0x1e8] sm:$0xff]
      %v815 = vld [vmem:[#allocation13 + $0x1f0] sm:$0xff]
      %v816 = vld [vmem:[#allocation13 + $0x1f8] sm:$0xff]
      %817 = vmatpush.msra.mxu0 %v813
      %818 = vmatpush.msra.mxu0 %v809
      %819 = vmatpush.msra.mxu0 %v805
      %820 = vmatpush.msra.mxu0 %v801
      %821 = vmatpush.msra.mxu0 %v797
      %822 = vmatpush.msra.mxu0 %v793
      %823 = vmatpush.msra.mxu0 %v789
      %824 = vmatpush.msra.mxu0 %v785
      %825 = vmatpush.msra.mxu0 %v781
      %826 = vmatpush.msra.mxu0 %v777
      %827 = vmatpush.msra.mxu0 %v773
      %828 = vmatpush.msra.mxu0 %v769
      %829 = vmatpush.msra.mxu0 %v765
      %830 = vmatpush.msra.mxu0 %v761
      %831 = vmatpush.msra.mxu0 %v757
      %832 = vmatpush.msra.mxu0 %v753
      %833 = vmatmul.f32.gmra.mxu0 %v592
      %v834 = vpop.f32.mrf.mxu0
      %v835 = vadd.f32 %v691, %v834
      %836 = vdwg.mxu0
      %837 = vmatpush.msra.mxu0 %v814
      %838 = vmatpush.msra.mxu0 %v810
      %839 = vmatpush.msra.mxu0 %v806
      %840 = vmatpush.msra.mxu0 %v802
      %841 = vmatpush.msra.mxu0 %v798
      %842 = vmatpush.msra.mxu0 %v794
      %843 = vmatpush.msra.mxu0 %v790
      %844 = vmatpush.msra.mxu0 %v786
      %845 = vmatpush.msra.mxu0 %v782
      %846 = vmatpush.msra.mxu0 %v778
      %847 = vmatpush.msra.mxu0 %v774
      %848 = vmatpush.msra.mxu0 %v770
      %849 = vmatpush.msra.mxu0 %v766
      %850 = vmatpush.msra.mxu0 %v762
      %851 = vmatpush.msra.mxu0 %v758
      %852 = vmatpush.msra.mxu0 %v754
      %853 = vmatmul.f32.gmra.mxu0 %v592
      %v854 = vpop.f32.mrf.mxu0
      %v855 = vadd.f32 %v711, %v854
      %856 = vdwg.mxu0
      %857 = vmatpush.msra.mxu0 %v815
      %858 = vmatpush.msra.mxu0 %v811
      %859 = vmatpush.msra.mxu0 %v807
      %860 = vmatpush.msra.mxu0 %v803
      %861 = vmatpush.msra.mxu0 %v799
      %862 = vmatpush.msra.mxu0 %v795
      %863 = vmatpush.msra.mxu0 %v791
      %864 = vmatpush.msra.mxu0 %v787
      %865 = vmatpush.msra.mxu0 %v783
      %866 = vmatpush.msra.mxu0 %v779
      %867 = vmatpush.msra.mxu0 %v775
      %868 = vmatpush.msra.mxu0 %v771
      %869 = vmatpush.msra.mxu0 %v767
      %870 = vmatpush.msra.mxu0 %v763
      %871 = vmatpush.msra.mxu0 %v759
      %872 = vmatpush.msra.mxu0 %v755
      %873 = vmatmul.f32.gmra.mxu0 %v592
      %v874 = vpop.f32.mrf.mxu0
      %v875 = vadd.f32 %v731, %v874
      %876 = vdwg.mxu0
      %877 = vmatpush.msra.mxu0 %v816
      %878 = vmatpush.msra.mxu0 %v812
      %879 = vmatpush.msra.mxu0 %v808
      %880 = vmatpush.msra.mxu0 %v804
      %881 = vmatpush.msra.mxu0 %v800
      %882 = vmatpush.msra.mxu0 %v796
      %883 = vmatpush.msra.mxu0 %v792
      %884 = vmatpush.msra.mxu0 %v788
      %885 = vmatpush.msra.mxu0 %v784
      %886 = vmatpush.msra.mxu0 %v780
      %887 = vmatpush.msra.mxu0 %v776
      %888 = vmatpush.msra.mxu0 %v772
      %889 = vmatpush.msra.mxu0 %v768
      %890 = vmatpush.msra.mxu0 %v764
      %891 = vmatpush.msra.mxu0 %v760
      %892 = vmatpush.msra.mxu0 %v756
      %893 = vmatmul.f32.gmra.mxu0 %v592
      %v894 = vpop.f32.mrf.mxu0
      %v895 = vadd.f32 %v751, %v894
      %896 = vdwg.mxu0
      %v897 = vxor.u32 %v835, 2147483648
      %v898 = vxor.u32 %v855, 2147483648
      %v899 = vxor.u32 %v875, 2147483648
      %v900 = vmul.f32 %v897, 1.442695
      %v901 = vpow.pop %v900
      %v902 = vmul.f32 %v898, 1.442695
      %v903 = vpow.pop %v902
      %v904 = vmul.f32 %v899, 1.442695
      %v905 = vpow.pop %v904
      %v906 = vadd.f32 %v901, 1.0
      %v907 = vadd.f32 %v903, 1.0
      %v908 = vadd.f32 %v905, 1.0
      %v909 = vrcp.pop %v906
      %v910 = vmul.f32 %v906, %v909
      %v911 = vsub.f32 1.0, %v910
      %v912 = vmul.f32 %v909, %v911
      %v913 = vadd.f32 %v909, %v912
      %vm914 = vweird.f32 %v906
      %vm915 = vweird.f32 %v909
      %vm916 = vmor %vm914, %vm915
      %v917 = vsel %vm916, %v909, %v913
      %v918 = vand.u32 2147483647, %v906
      %vm919 = vcmp.eq.f32.partialorder %v918, 8.507059e+37
      %v920 = vand.u32 %v906, 2147483648
      %v921 = vor.u32 1.1754944e-38, %v920
      %v922 = vsel %vm919, %v921, %v917
      %v923 = vmul.f32 1.0, %v922
      %v924 = vrcp.pop %v907
      %v925 = vmul.f32 %v907, %v924
      %v926 = vsub.f32 1.0, %v925
      %v927 = vmul.f32 %v924, %v926
      %v928 = vadd.f32 %v924, %v927
      %vm929 = vweird.f32 %v907
      %vm930 = vweird.f32 %v924
      %vm931 = vmor %vm929, %vm930
      %v932 = vsel %vm931, %v924, %v928
      %v933 = vand.u32 2147483647, %v907
      %vm934 = vcmp.eq.f32.partialorder %v933, 8.507059e+37
      %v935 = vand.u32 %v907, 2147483648
      %v936 = vor.u32 1.1754944e-38, %v935
      %v937 = vsel %vm934, %v936, %v932
      %v938 = vmul.f32 1.0, %v937
      %v939 = vrcp.pop %v908
      %v940 = vmul.f32 %v908, %v939
      %v941 = vsub.f32 1.0, %v940
      %v942 = vmul.f32 %v939, %v941
      %v943 = vadd.f32 %v939, %v942
      %vm944 = vweird.f32 %v908
      %vm945 = vweird.f32 %v939
      %vm946 = vmor %vm944, %vm945
      %v947 = vsel %vm946, %v939, %v943
      %v948 = vand.u32 2147483647, %v908
      %vm949 = vcmp.eq.f32.partialorder %v948, 8.507059e+37
      %v950 = vand.u32 %v908, 2147483648
      %v951 = vor.u32 1.1754944e-38, %v950
      %v952 = vsel %vm949, %v951, %v947
      %v953 = vmul.f32 1.0, %v952
      %v954 = vtanh.pop %v895
      %s955 = scalar_lea.vmem [#allocation10], 8
      %v956 = vld [vmem:[%s955] sm:$0xff]
      %v957 = vmul.f32 %v938, %v956
      %v958 = vmul.f32 %v923, %v954
      %v959 = vadd.f32 %v957, %v958
      %v960 = vtanh.pop %v959
      %v961 = vmul.f32 %v953, %v960
      %s962 = scalar_lea.vmem [#allocation19], 8
      %963 = vst [vmem:[%s962] sm:$0xff] %v961
      %s964 = scalar_lea.vmem [#allocation21], 8
      %965 = vst [vmem:[%s964] sm:$0xff] %v959
      %966 = vst [vmem:[#allocation3] sm:$0xff] %v961
    $region69: #{tpu_custom_call.1} parent=1 // pred_fallthru
      _
    %v967 = vld [vmem:[#allocation3] sm:$0xff]
    %v968 = vld [vmem:[#allocation16] sm:$0xff]
    %v969 = vld [vmem:[#allocation16 + $0x8] sm:$0xff]
    %v970 = vld [vmem:[#allocation16 + $0x10] sm:$0xff]
    %v971 = vld [vmem:[#allocation16 + $0x18] sm:$0xff]
    %v972 = vld [vmem:[#allocation16 + $0x20] sm:$0xff]
    %v973 = vld [vmem:[#allocation16 + $0x28] sm:$0xff]
    %v974 = vld [vmem:[#allocation16 + $0x30] sm:$0xff]
    %v975 = vld [vmem:[#allocation16 + $0x38] sm:$0xff]
    %v976 = vld [vmem:[#allocation16 + $0x40] sm:$0xff]
    %v977 = vld [vmem:[#allocation16 + $0x48] sm:$0xff]
    %v978 = vld [vmem:[#allocation16 + $0x50] sm:$0xff]
    %v979 = vld [vmem:[#allocation16 + $0x58] sm:$0xff]
    %v980 = vld [vmem:[#allocation16 + $0x60] sm:$0xff]
    %v981 = vld [vmem:[#allocation16 + $0x68] sm:$0xff]
    %v982 = vld [vmem:[#allocation16 + $0x70] sm:$0xff]
    %v983 = vld [vmem:[#allocation16 + $0x78] sm:$0xff]
    %v984 = vld [vmem:[%s9] sm:$0x1]
    %v986 = vperm.slane %v984, 0
    %988 = vmatpush.msra.mxu0 %v983
    %989 = vmatpush.msra.mxu0 %v982
    %990 = vmatpush.msra.mxu0 %v981
    %991 = vmatpush.msra.mxu0 %v980
    %992 = vmatpush.msra.mxu0 %v979
    %993 = vmatpush.msra.mxu0 %v978
    %994 = vmatpush.msra.mxu0 %v977
    %995 = vmatpush.msra.mxu0 %v976
    %996 = vmatpush.msra.mxu0 %v975
    %997 = vmatpush.msra.mxu0 %v974
    %998 = vmatpush.msra.mxu0 %v973
    %999 = vmatpush.msra.mxu0 %v972
    %1000 = vmatpush.msra.mxu0 %v971
    %1001 = vmatpush.msra.mxu0 %v970
    %1002 = vmatpush.msra.mxu0 %v969
    %1003 = vmatpush.msra.mxu0 %v968
    %1004 = vmatmul.f32.gmra.mxu0 %v967
    %v1005 = vpop.f32.mrf.mxu0
    %v1006 = vadd.f32 %v986, %v1005
    %1007 = vdwg.mxu0
    %1008 = vst [vmem:[#allocation18] sm:$0xff] %v1006
    // Predicated region
    $region130: #{tpu_custom_call.1} parent=1 // pred_check
      _
    $region131: #{tpu_custom_call.1} parent=1 // pred_check_branch
      %1010 = sbr.rel (0) target = $region133
    $region132: #{tpu_custom_call.1} parent=1 // pred_region
      %1012 = vsyncadd [#allocation7], 0
      %s1014 = sshll.u32 [#allocation18], 4
      %s1015 = int_to_ptr.vmem [resolvable:$true] %s1014
      %s1016 = sshll.u32 %s10, 4
      %s1017 = int_to_ptr.hbm [resolvable:$true] %s1016
      %1019 = dma.vmem_to_hbm [thread:$0]  %s1015, 128, %s1017, [#allocation7]
    $region133: #{tpu_custom_call.1} parent=1 // pred_fallthru
      _
    // Predicated region
    $region134: #{tpu_custom_call.1} parent=1 // pred_check
      _
    $region135: #{tpu_custom_call.1} parent=1 // pred_check_branch
      %1021 = sbr.rel (0) target = $region137
    $region136: #{tpu_custom_call.1} parent=1 // pred_region
      %1023 = vsyncadd [#allocation20], 0
      %s1024 = sshll.u32 [#allocation19], 4
      %s1025 = int_to_ptr.vmem [resolvable:$true] %s1024
      %s1026 = sshll.u32 %s11, 4
      %s1027 = int_to_ptr.hbm [resolvable:$true] %s1026
      %1032 = dma.vmem_to_hbm [thread:$0]  %s1025, 256, %s1027, [#allocation20], 128, 128, 8
    $region137: #{tpu_custom_call.1} parent=1 // pred_fallthru
      _
    // Predicated region
    $region138: #{tpu_custom_call.1} parent=1 // pred_check
      _
    $region139: #{tpu_custom_call.1} parent=1 // pred_check_branch
      %1034 = sbr.rel (0) target = $region141
    $region140: #{tpu_custom_call.1} parent=1 // pred_region
      %1036 = vsyncadd [#allocation20], 0
      %s1037 = sshll.u32 [#allocation21], 4
      %s1038 = int_to_ptr.vmem [resolvable:$true] %s1037
      %s1039 = sshll.u32 %s12, 4
      %s1040 = int_to_ptr.hbm [resolvable:$true] %s1039
      %1045 = dma.vmem_to_hbm [thread:$0]  %s1038, 256, %s1040, [#allocation20], 128, 128, 8
    $region141: #{tpu_custom_call.1} parent=1 // pred_fallthru
      _
    // Predicated region
    $region142: #{tpu_custom_call.1} parent=1 // pred_check
      _
    $region143: #{tpu_custom_call.1} parent=1 // pred_check_branch
      %1047 = sbr.rel (0) target = $region145
    $region144: #{tpu_custom_call.1} parent=1 // pred_region
      %1049 = dma.done [#allocation7], 128
    $region145: #{tpu_custom_call.1} parent=1 // pred_fallthru
      _
    // Predicated region
    $region146: #{tpu_custom_call.1} parent=1 // pred_check
      _
    $region147: #{tpu_custom_call.1} parent=1 // pred_check_branch
      %1051 = sbr.rel (0) target = $region149
    $region148: #{tpu_custom_call.1} parent=1 // pred_region
      %1053 = dma.done [#allocation20], 256
    $region149: #{tpu_custom_call.1} parent=1 // pred_fallthru
      _
    // Predicated region
    $region150: #{tpu_custom_call.1} parent=1 // pred_check
      _
    $region151: #{tpu_custom_call.1} parent=1 // pred_check_branch
      %1055 = sbr.rel (0) target = $region153
    $region152: #{tpu_custom_call.1} parent=1 // pred_region
      %1057 = dma.done [#allocation20], 256
    $region153: #{tpu_custom_call.1} parent=1 // pred_fallthru
      _
    %1058 = vsyncpa [#allocation6], 1
    %1059 = vsyncpa [#allocation11], 1
    %1060 = vsyncpa [#allocation14], 1
    %1061 = vsyncpa [#allocation17], 1
    %1062 = vsyncpa [#allocation7], 1
    %1063 = vsyncpa [#allocation20], 1
    %1064 = vsyncpa [#allocation8], 1
  %1065 = vsyncmov [#allocation4]
  %s1066 = vpop.sfrf %1065
  %p1067 = scmp.eq.s32.totalorder %s1066, 0
  %p1068 = pneg %p1067
  %1070 = shalt.err (%p1068)
  %s1071 = scalar_lea.sflag [#allocation4], 1
  %1072 = vsyncmov %s1071
  %s1073 = vpop.sfrf %1072
  %p1074 = scmp.eq.s32.totalorder %s1073, 0
  %p1075 = pneg %p1074
  %1077 = shalt.err (%p1075)

</llo_original>
